<compile_context>
chip_gen: v6e
topology: v6e:2x2x1
jax: 0.10.0
libtpu: 0.0.40
codegen_flags: <defaults>
</compile_context>

<pallas_src>
import jax
import jax.numpy as jnp
from jax.experimental import pallas as pl
from jax.experimental.pallas import tpu as pltpu


def _cdiv(a, b):
    return -(-a // b)


def _vmem_capacity_bytes():
    """Physical per-core VMEM, with a conservative (v7x) fallback."""
    try:
        info = pltpu.get_tpu_info()
        cap = getattr(info, "vmem_capacity_bytes", None)
        if cap:
            return int(cap)
    except Exception:
        pass
    return 64 * 1024 * 1024


def _combined_kernel(x_ref, wh_ref, bh_ref, wf_ref, bf_ref, out_ref, acc_ref):
    k = pl.program_id(1)

    @pl.when(k == 0)
    def _():
        acc_ref[...] = jnp.zeros_like(acc_ref)

    # Fused heads, K-chunked: acc += x_chunk @ Wh_chunk (f32 accumulation).
    # x is cast to the compute dtype here (not in the wrapper) to avoid an
    # extra HBM pass over the activations.
    x = x_ref[...].astype(wh_ref.dtype)
    acc_ref[...] += jnp.dot(x, wh_ref[...], preferred_element_type=jnp.float32)

    @pl.when(k == pl.num_programs(1) - 1)
    def _():
        # concat(h1..h4) + ReLU.  Padded NH columns stay exactly zero
        # (zero weights + zero bias + ReLU).
        h = jnp.maximum(acc_ref[...] + bh_ref[...], 0.0)

        # fc1 + ReLU.  Padded F columns stay exactly zero.
        y = jnp.dot(h.astype(wf_ref.dtype), wf_ref[...],
                    preferred_element_type=jnp.float32)
        y = jnp.maximum(y + bf_ref[...], 0.0)

        # F.normalize(p=2, dim=1): y / max(||y||_2, 1e-12)
        #   == y * rsqrt(max(||y||_2^2, 1e-24))   (sqrt is monotone)
        ss = jnp.sum(y * y, axis=1, keepdims=True)
        out_ref[...] = (y * jax.lax.rsqrt(jnp.maximum(ss, 1e-24))
                        ).astype(out_ref.dtype)


_TK_TARGET = 1024  # target K-reduction chunk (multiple of 128)


def prepare_combined_tri_net(params, act_dim, input_shape,
                             compute_dtype=jnp.bfloat16):
    """One-time parameter preprocessing (scatter, pad, cast).  Do NOT call
    per forward pass — its output is reused across calls."""
    C, H, W = input_shape
    (w1, b1), (w2, b2), (w3, b3), (w4, b4), (wf, bf) = params
    emd_dim = w1.shape[1]
    feature_dim = wf.shape[1]
    NH = 4 * emd_dim
    K = C * H * W

    # Feature-axis slice bounds, exactly as the PyTorch forward does.
    bounds = ((0, act_dim),
              (act_dim, act_dim + 1),
              (act_dim + 1, act_dim + 11),
              (act_dim + 11, W))
    widths = tuple(hi - lo for lo, hi in bounds)
    assert all(wd > 0 for wd in widths) and sum(widths) == W, (
        f"slice widths {widths} do not tile W={W} (act_dim={act_dim})")
    for idx, ((w_i, b_i), wd) in enumerate(zip(params[:4], widths)):
        assert w_i.shape == (C * H * wd, emd_dim), (
            f"head {idx}: weight shape {w_i.shape} != {(C * H * wd, emd_dim)}")
        assert b_i.shape == (emd_dim,)
    assert wf.shape == (NH, feature_dim) and bf.shape == (feature_dim,)

    # Padded sizes: lane-dense intermediates / outputs, 128-aligned K chunks
    # sized to minimize zero-padding while staying near _TK_TARGET.
    NH_pad = 128 * _cdiv(NH, 128)
    F_pad = 128 * _cdiv(feature_dim, 128)
    K128 = 128 * _cdiv(K, 128)
    n_k = _cdiv(K128, _TK_TARGET)
    tk = 128 * _cdiv(K128 // 128, n_k)
    K_pad = tk * n_k

    # Block-structured head weight (K_pad, NH_pad): scatter each head's rows
    # into the positions its flattened slice occupies in the fully flattened
    # input, so one matmul reproduces the four heads + the channel concat.
    wh = jnp.zeros((C, H, W, NH_pad), jnp.float32)
    for i, ((w_i, _b), (lo, hi)) in enumerate(zip(params[:4], bounds)):
        wd = hi - lo
        wh = wh.at[:, :, lo:hi, i * emd_dim:(i + 1) * emd_dim].set(
            w_i.reshape(C, H, wd, emd_dim))
    wh = wh.reshape(K, NH_pad)
    wh = jnp.pad(wh, ((0, K_pad - K), (0, 0)))
    bh = jnp.zeros((1, NH_pad), jnp.float32).at[0, :NH].set(
        jnp.concatenate([b1, b2, b3, b4]))

    wf_p = jnp.zeros((NH_pad, F_pad), jnp.float32).at[:NH, :feature_dim].set(wf)
    bf_p = jnp.zeros((1, F_pad), jnp.float32).at[0, :feature_dim].set(bf)

    return dict(
        wh=jax.block_until_ready(wh.astype(compute_dtype)),
        bh=jax.block_until_ready(bh),
        wf=jax.block_until_ready(wf_p.astype(compute_dtype)),
        bf=jax.block_until_ready(bf_p),
        compute_dtype=jnp.dtype(compute_dtype),
        C=C, H=H, W=W, K=K, K_pad=K_pad, tk=tk,
        NH_pad=NH_pad, F_pad=F_pad, feature_dim=feature_dim,
    )


def combined_tri_net_forward(x, prepared, *, tm_cap=1024):
    """x: (B, C, H, W) float32 NCHW.  Returns (B, feature_dim) L2-normalized."""
    B, C, H, W = x.shape
    assert (C, H, W) == (prepared["C"], prepared["H"], prepared["W"])
    K, K_pad, tk = prepared["K"], prepared["K_pad"], prepared["tk"]
    NH_pad, F_pad = prepared["NH_pad"], prepared["F_pad"]
    feature_dim = prepared["feature_dim"]
    compute_dtype = prepared["compute_dtype"]
    n_k = K_pad // tk
    w_item = compute_dtype.itemsize
    x_item = jnp.dtype(x.dtype).itemsize

    # ---- Generation-aware VMEM budget -> batch tile TM ------------------
    budget = int(0.75 * _vmem_capacity_bytes())   # ~48 MiB v7x, ~96 MiB v5e/v6e
    resident = (2 * tk * NH_pad * w_item          # Wh K-chunk (assume 2 bufs)
                + 2 * NH_pad * F_pad * w_item     # fc1 weight
                + 2 * (NH_pad + F_pad) * 4)       # biases
    per_tm = (2 * tk * x_item                     # streamed x chunk (2 bufs)
              + 2 * F_pad * 4                     # output tile (2 bufs)
              + NH_pad * 4                        # f32 accumulator scratch
              + 2 * (NH_pad + F_pad) * 4)         # epilogue temporaries (slack)
    align = 16 if compute_dtype == jnp.bfloat16 else 8
    tm_budget = max(align, (budget - resident - (4 << 20)) // per_tm)
    tm_budget = min(tm_cap, align * (tm_budget // align))

    B_al = align * _cdiv(B, align)
    TM = min(tm_budget, B_al)
    # v7x megacore: ensure >= 2 grid steps on the "parallel" batch axis
    # whenever the batch is large enough to split.
    if B_al // TM < 2 and B_al >= 2 * align:
        TM = max(align, align * (B_al // (2 * align)))
    B_pad = TM * _cdiv(B, TM)

    # ---- Per-call activation plumbing (reshape + zero-pad only) ---------
    x_flat = x.reshape(B, K)
    if B_pad != B or K_pad != K:
        x_flat = jnp.pad(x_flat, ((0, B_pad - B), (0, K_pad - K)))

    grid = (B_pad // TM, n_k)

    def call(single_buffer_resident):
        def resident_spec(shape):
            if single_buffer_resident:
                return pl.BlockSpec(shape, lambda i, k: (0, 0),
                                    pipeline_mode=pl.Buffered(1))
            return pl.BlockSpec(shape, lambda i, k: (0, 0))

        if n_k == 1 and single_buffer_resident:
            wh_spec = pl.BlockSpec((tk, NH_pad), lambda i, k: (k, 0),
                                   pipeline_mode=pl.Buffered(1))
        else:
            wh_spec = pl.BlockSpec((tk, NH_pad), lambda i, k: (k, 0))

        return pl.pallas_call(
            _combined_kernel,
            out_shape=jax.ShapeDtypeStruct((B_pad, F_pad), jnp.float32),
            grid_spec=pltpu.PrefetchScalarGridSpec(
                num_scalar_prefetch=0,
                grid=grid,
                in_specs=[
                    pl.BlockSpec((TM, tk), lambda i, k: (i, k)),  # streamed x
                    wh_spec,                                      # head weights
                    resident_spec((1, NH_pad)),                   # head biases
                    resident_spec((NH_pad, F_pad)),               # fc1 weight
                    resident_spec((1, F_pad)),                    # fc1 bias
                ],
                out_specs=pl.BlockSpec((TM, F_pad), lambda i, k: (i, 0)),
                scratch_shapes=[pltpu.VMEM((TM, NH_pad), jnp.float32)],
            ),
            compiler_params=pltpu.CompilerParams(
                dimension_semantics=("parallel", "arbitrary"),
                vmem_limit_bytes=budget,
            ),
        )(x_flat, prepared["wh"], prepared["bh"],
          prepared["wf"], prepared["bf"])

    try:
        out = call(True)
    except Exception:
        # pipeline_mode / Buffered(1) not supported on this JAX version ->
        # fall back to default double-buffered resident weights.
        out = call(False)

    return out[:B, :feature_dim]


def init_params(key, in_dims, emd_dim, feature_dim):
    """Deterministic synthetic parameters (this is not a checkpoint load)."""
    keys = jax.random.split(key, 10)
    params = []
    for i, k_in in enumerate(in_dims):
        w = 0.05 * jax.random.normal(keys[2 * i], (k_in, emd_dim), jnp.float32)
        b = 0.05 * jax.random.normal(keys[2 * i + 1], (emd_dim,), jnp.float32)
        params.append((w, b))
    wf = 0.05 * jax.random.normal(keys[8], (emd_dim * 4, feature_dim), jnp.float32)
    bf = 0.05 * jax.random.normal(keys[9], (feature_dim,), jnp.float32)
    params.append((wf, bf))
    return tuple(params)


def reference_forward(x, params, act_dim, compute_dtype=jnp.float32):
    """Pure-JAX reference mirroring the PyTorch semantics.

    With compute_dtype=float32 this is the exact module forward; with bf16 it
    applies the same input/weight quantization the kernel uses (f32 math)."""
    B = x.shape[0]
    slices = (x[:, :, :, :act_dim],
              x[:, :, :, act_dim:act_dim + 1],
              x[:, :, :, act_dim + 1:act_dim + 11],
              x[:, :, :, act_dim + 11:])

    def q(a):
        return a.astype(compute_dtype).astype(jnp.float32)

    hs = []
    for (w, b), s in zip(params[:4], slices):
        hs.append(jnp.maximum(q(s.reshape(B, -1)) @ q(w) + b, 0.0))
    h = jnp.concatenate(hs, axis=1)
    wf, bf = params[4]
    y = jnp.maximum(q(h) @ q(wf) + bf, 0.0)
    nrm = jnp.sqrt(jnp.sum(y * y, axis=1, keepdims=True))
    return y / jnp.maximum(nrm, 1e-12)


if __name__ == "__main__":
    # Small deterministic shapes: B=2, C=4, H=16, act_dim=8, prob_dim=5 -> W=24.
    B, C, H = 2, 4, 16
    act_dim = 8
    prob_dim = 5
    W = act_dim + 1 + 10 + prob_dim        # = 24
    emd_dim = 16
    feature_dim = 64                       # fc1: Linear(emd_dim*4=64 -> 64)

    key = jax.random.PRNGKey(0)
    kx, kp = jax.random.split(key)
    x = jax.random.normal(kx, (B, C, H, W), jnp.float32)

    in_dims = (C * H * act_dim, C * H * 1, C * H * 10, C * H * prob_dim)
    params = init_params(kp, in_dims, emd_dim, feature_dim)

    # Exact-precision path vs the PyTorch-semantic f32 reference.
    prep_f32 = prepare_combined_tri_net(params, act_dim, (C, H, W),
                                        compute_dtype=jnp.float32)
    out_f32 = jax.block_until_ready(combined_tri_net_forward(x, prep_f32))
    ref_f32 = jax.block_until_ready(
        reference_forward(x, params, act_dim, jnp.float32))
    assert out_f32.shape == (B, feature_dim)
    assert jnp.allclose(out_f32, ref_f32, atol=1e-4, rtol=1e-4), \
        "f32 mismatch vs reference"

    # Performance path (bf16 MXU inputs, f32 accumulation / epilogue) vs the
    # identically-quantized reference.
    prep_bf16 = prepare_combined_tri_net(params, act_dim, (C, H, W),
                                         compute_dtype=jnp.bfloat16)
    out_bf16 = jax.block_until_ready(combined_tri_net_forward(x, prep_bf16))
    ref_bf16 = jax.block_until_ready(
        reference_forward(x, params, act_dim, jnp.bfloat16))
    assert out_bf16.shape == (B, feature_dim)
    assert jnp.allclose(out_bf16, ref_bf16, atol=2e-3, rtol=2e-3), \
        "bf16 mismatch vs reference"

    print("KERNEL_OK")
</pallas_src>

<mosaic_0001>
module attributes {stable_mosaic.version = 11 : i64} {
  func.func @_combined_kernel(%arg0: i32, %arg1: i32, %arg2: memref<8x768xf32, #tpu.memory_space<vmem>>, %arg3: memref<768x128xf32, #tpu.memory_space<vmem>>, %arg4: memref<1x128xf32, #tpu.memory_space<vmem>>, %arg5: memref<128x128xf32, #tpu.memory_space<vmem>>, %arg6: memref<1x128xf32, #tpu.memory_space<vmem>>, %arg7: memref<8x128xf32, #tpu.memory_space<vmem>>, %arg8: memref<8x128xf32, #tpu.memory_space<vmem>>) attributes {dimension_semantics = [#tpu.dimension_semantics<parallel>, #tpu.dimension_semantics<arbitrary>], iteration_bounds = array<i64: 1, 2>, scalar_prefetch = 0 : i64, scratch_operands = 1 : i64, tpu.core_type = #tpu.core_type<tc>, window_params = [{transform_indices = @transform_0, window_bounds = array<i64: 8, 768>}, {transform_indices = @transform_1, window_bounds = array<i64: 768, 128>}, {pipeline_mode = #tpu.pipeline_mode<synchronous>, transform_indices = @transform_2, window_bounds = array<i64: 1, 128>}, {pipeline_mode = #tpu.pipeline_mode<synchronous>, transform_indices = @transform_3, window_bounds = array<i64: 128, 128>}, {pipeline_mode = #tpu.pipeline_mode<synchronous>, transform_indices = @transform_4, window_bounds = array<i64: 1, 128>}, {transform_indices = @transform_5, window_bounds = array<i64: 8, 128>}]} {
    %c0_i32 = arith.constant 0 : i32
    %0 = arith.cmpi eq, %arg1, %c0_i32 : i32
    %1 = arith.extui %0 : i1 to i32
    %c0_i32_0 = arith.constant 0 : i32
    %2 = arith.cmpi ne, %1, %c0_i32_0 : i32
    scf.if %2 {
      %cst_9 = arith.constant 0.000000e+00 : f32
      %12 = vector.broadcast %cst_9 : f32 to vector<8x128xf32>
      %c0_10 = arith.constant 0 : index
      %c0_11 = arith.constant 0 : index
      %13 = vector.load %arg8[%c0_10, %c0_11] : memref<8x128xf32, #tpu.memory_space<vmem>>, vector<8x128xf32>
      tpu.vector_store %arg8[%c0_10, %c0_11], %12 {strides = array<i32>} : memref<8x128xf32, #tpu.memory_space<vmem>>, vector<8x128xf32>,
    } else {
    }
    %c0 = arith.constant 0 : index
    %c0_1 = arith.constant 0 : index
    %3 = vector.load %arg2[%c0, %c0_1] : memref<8x768xf32, #tpu.memory_space<vmem>>, vector<8x768xf32>
    %c0_2 = arith.constant 0 : index
    %c0_3 = arith.constant 0 : index
    %4 = vector.load %arg8[%c0_2, %c0_3] : memref<8x128xf32, #tpu.memory_space<vmem>>, vector<8x128xf32>
    %c0_4 = arith.constant 0 : index
    %c0_5 = arith.constant 0 : index
    %5 = vector.load %arg3[%c0_4, %c0_5] : memref<768x128xf32, #tpu.memory_space<vmem>>, vector<768x128xf32>
    %cst = arith.constant dense<0.000000e+00> : vector<8x128xf32>
    %6 = tpu.matmul %3, %5, %cst {dimension_numbers = #tpu.dot_dimension_numbers<[1], [0], [0], [1], [0, 0, 1, 1], [], []>} : vector<8x768xf32>, vector<768x128xf32>, vector<8x128xf32> -> vector<8x128xf32>
    %7 = arith.addf %4, %6 : vector<8x128xf32>
    %c0_6 = arith.constant 0 : index
    %c0_7 = arith.constant 0 : index
    %8 = vector.load %arg8[%c0_6, %c0_7] : memref<8x128xf32, #tpu.memory_space<vmem>>, vector<8x128xf32>
    tpu.vector_store %arg8[%c0_6, %c0_7], %7 {strides = array<i32>} : memref<8x128xf32, #tpu.memory_space<vmem>>, vector<8x128xf32>,
    %c1_i32 = arith.constant 1 : i32
    %9 = arith.cmpi eq, %arg1, %c1_i32 : i32
    %10 = arith.extui %9 : i1 to i32
    %c0_i32_8 = arith.constant 0 : i32
    %11 = arith.cmpi ne, %10, %c0_i32_8 : i32
    scf.if %11 {
      %c0_9 = arith.constant 0 : index
      %c0_10 = arith.constant 0 : index
      %12 = vector.load %arg8[%c0_9, %c0_10] : memref<8x128xf32, #tpu.memory_space<vmem>>, vector<8x128xf32>
      %c0_11 = arith.constant 0 : index
      %c0_12 = arith.constant 0 : index
      %13 = vector.load %arg4[%c0_11, %c0_12] : memref<1x128xf32, #tpu.memory_space<vmem>>, vector<1x128xf32>
      %14 = vector.broadcast %13 : vector<1x128xf32> to vector<8x128xf32>
      %15 = arith.addf %12, %14 : vector<8x128xf32>
      %cst_13 = arith.constant 0.000000e+00 : f32
      %16 = vector.broadcast %cst_13 : f32 to vector<8x128xf32>
      %17 = arith.maximumf %15, %16 : vector<8x128xf32>
      %c0_14 = arith.constant 0 : index
      %c0_15 = arith.constant 0 : index
      %18 = vector.load %arg5[%c0_14, %c0_15] : memref<128x128xf32, #tpu.memory_space<vmem>>, vector<128x128xf32>
      %cst_16 = arith.constant dense<0.000000e+00> : vector<8x128xf32>
      %19 = tpu.matmul %17, %18, %cst_16 {dimension_numbers = #tpu.dot_dimension_numbers<[1], [0], [0], [1], [0, 0, 1, 1], [], []>} : vector<8x128xf32>, vector<128x128xf32>, vector<8x128xf32> -> vector<8x128xf32>
      %c0_17 = arith.constant 0 : index
      %c0_18 = arith.constant 0 : index
      %20 = vector.load %arg6[%c0_17, %c0_18] : memref<1x128xf32, #tpu.memory_space<vmem>>, vector<1x128xf32>
      %21 = vector.broadcast %20 : vector<1x128xf32> to vector<8x128xf32>
      %22 = arith.addf %19, %21 : vector<8x128xf32>
      %cst_19 = arith.constant 0.000000e+00 : f32
      %23 = vector.broadcast %cst_19 : f32 to vector<8x128xf32>
      %24 = arith.maximumf %22, %23 : vector<8x128xf32>
      %25 = arith.mulf %24, %24 : vector<8x128xf32>
      %cst_20 = arith.constant dense<0.000000e+00> : vector<8xf32>
      %26 = vector.multi_reduction <add>, %25, %cst_20 [1] : vector<8x128xf32> to vector<8xf32>
      %27 = vector.shape_cast %26 : vector<8xf32> to vector<8x1xf32>
      %cst_21 = arith.constant 1.000000e-24 : f32
      %28 = vector.broadcast %cst_21 : f32 to vector<8x1xf32>
      %29 = arith.maximumf %27, %28 : vector<8x1xf32>
      %30 = math.rsqrt %29 : vector<8x1xf32>
      %31 = vector.broadcast %30 : vector<8x1xf32> to vector<8x128xf32>
      %32 = arith.mulf %24, %31 : vector<8x128xf32>
      %c0_22 = arith.constant 0 : index
      %c0_23 = arith.constant 0 : index
      %33 = vector.load %arg7[%c0_22, %c0_23] : memref<8x128xf32, #tpu.memory_space<vmem>>, vector<8x128xf32>
      tpu.vector_store %arg7[%c0_22, %c0_23], %32 {strides = array<i32>} : memref<8x128xf32, #tpu.memory_space<vmem>>, vector<8x128xf32>,
    } else {
    }
    return
  }
  func.func @transform_0(%arg0: i32, %arg1: i32) -> (i32, i32) {
    %c0_i32 = arith.constant 0 : i32
    return %arg0, %arg1 : i32, i32
  }
  func.func @transform_1(%arg0: i32, %arg1: i32) -> (i32, i32) {
    %c0_i32 = arith.constant 0 : i32
    %c0_i32_0 = arith.constant 0 : i32
    return %arg1, %c0_i32 : i32, i32
  }
  func.func @transform_2(%arg0: i32, %arg1: i32) -> (i32, i32) {
    %c0_i32 = arith.constant 0 : i32
    %c0_i32_0 = arith.constant 0 : i32
    %c0_i32_1 = arith.constant 0 : i32
    return %c0_i32, %c0_i32_0 : i32, i32
  }
  func.func @transform_3(%arg0: i32, %arg1: i32) -> (i32, i32) {
    %c0_i32 = arith.constant 0 : i32
    %c0_i32_0 = arith.constant 0 : i32
    %c0_i32_1 = arith.constant 0 : i32
    return %c0_i32, %c0_i32_0 : i32, i32
  }
  func.func @transform_4(%arg0: i32, %arg1: i32) -> (i32, i32) {
    %c0_i32 = arith.constant 0 : i32
    %c0_i32_0 = arith.constant 0 : i32
    %c0_i32_1 = arith.constant 0 : i32
    return %c0_i32, %c0_i32_0 : i32, i32
  }
  func.func @transform_5(%arg0: i32, %arg1: i32) -> (i32, i32) {
    %c0_i32 = arith.constant 0 : i32
    %c0_i32_0 = arith.constant 0 : i32
    return %arg0, %c0_i32 : i32, i32
  }
}

module attributes {stable_mosaic.version = 11 : i64} {
  func.func @_combined_kernel(%arg0: i32, %arg1: i32, %arg2: memref<8x768xf32, #tpu.memory_space<vmem>>, %arg3: memref<768x128xf32, #tpu.memory_space<vmem>>, %arg4: memref<1x128xf32, #tpu.memory_space<vmem>>, %arg5: memref<128x128xf32, #tpu.memory_space<vmem>>, %arg6: memref<1x128xf32, #tpu.memory_space<vmem>>, %arg7: memref<8x128xf32, #tpu.memory_space<vmem>>, %arg8: memref<8x128xf32, #tpu.memory_space<vmem>>) attributes {dimension_semantics = [#tpu.dimension_semantics<parallel>, #tpu.dimension_semantics<arbitrary>], iteration_bounds = array<i64: 1, 2>, scalar_prefetch = 0 : i64, scratch_operands = 1 : i64, tpu.core_type = #tpu.core_type<tc>, window_params = [{transform_indices = @transform_0, window_bounds = array<i64: 8, 768>}, {transform_indices = @transform_1, window_bounds = array<i64: 768, 128>}, {pipeline_mode = #tpu.pipeline_mode<synchronous>, transform_indices = @transform_2, window_bounds = array<i64: 1, 128>}, {pipeline_mode = #tpu.pipeline_mode<synchronous>, transform_indices = @transform_3, window_bounds = array<i64: 128, 128>}, {pipeline_mode = #tpu.pipeline_mode<synchronous>, transform_indices = @transform_4, window_bounds = array<i64: 1, 128>}, {transform_indices = @transform_5, window_bounds = array<i64: 8, 128>}]} {
    %c0_i32 = arith.constant 0 : i32
    %0 = arith.cmpi eq, %arg1, %c0_i32 : i32
    %1 = arith.extui %0 : i1 to i32
    %c0_i32_0 = arith.constant 0 : i32
    %2 = arith.cmpi ne, %1, %c0_i32_0 : i32
    scf.if %2 {
      %cst_9 = arith.constant 0.000000e+00 : f32
      %12 = vector.broadcast %cst_9 : f32 to vector<8x128xf32>
      %c0_10 = arith.constant 0 : index
      %c0_11 = arith.constant 0 : index
      %13 = vector.load %arg8[%c0_10, %c0_11] : memref<8x128xf32, #tpu.memory_space<vmem>>, vector<8x128xf32>
      tpu.vector_store %arg8[%c0_10, %c0_11], %12 {strides = array<i32>} : memref<8x128xf32, #tpu.memory_space<vmem>>, vector<8x128xf32>,
    } else {
    }
    %c0 = arith.constant 0 : index
    %c0_1 = arith.constant 0 : index
    %3 = vector.load %arg2[%c0, %c0_1] : memref<8x768xf32, #tpu.memory_space<vmem>>, vector<8x768xf32>
    %c0_2 = arith.constant 0 : index
    %c0_3 = arith.constant 0 : index
    %4 = vector.load %arg8[%c0_2, %c0_3] : memref<8x128xf32, #tpu.memory_space<vmem>>, vector<8x128xf32>
    %c0_4 = arith.constant 0 : index
    %c0_5 = arith.constant 0 : index
    %5 = vector.load %arg3[%c0_4, %c0_5] : memref<768x128xf32, #tpu.memory_space<vmem>>, vector<768x128xf32>
    %cst = arith.constant dense<0.000000e+00> : vector<8x128xf32>
    %6 = tpu.matmul %3, %5, %cst {dimension_numbers = #tpu.dot_dimension_numbers<[1], [0], [0], [1], [0, 0, 1, 1], [], []>} : vector<8x768xf32>, vector<768x128xf32>, vector<8x128xf32> -> vector<8x128xf32>
    %7 = arith.addf %4, %6 : vector<8x128xf32>
    %c0_6 = arith.constant 0 : index
    %c0_7 = arith.constant 0 : index
    %8 = vector.load %arg8[%c0_6, %c0_7] : memref<8x128xf32, #tpu.memory_space<vmem>>, vector<8x128xf32>
    tpu.vector_store %arg8[%c0_6, %c0_7], %7 {strides = array<i32>} : memref<8x128xf32, #tpu.memory_space<vmem>>, vector<8x128xf32>,
    %c1_i32 = arith.constant 1 : i32
    %9 = arith.cmpi eq, %arg1, %c1_i32 : i32
    %10 = arith.extui %9 : i1 to i32
    %c0_i32_8 = arith.constant 0 : i32
    %11 = arith.cmpi ne, %10, %c0_i32_8 : i32
    scf.if %11 {
      %c0_9 = arith.constant 0 : index
      %c0_10 = arith.constant 0 : index
      %12 = vector.load %arg8[%c0_9, %c0_10] : memref<8x128xf32, #tpu.memory_space<vmem>>, vector<8x128xf32>
      %c0_11 = arith.constant 0 : index
      %c0_12 = arith.constant 0 : index
      %13 = vector.load %arg4[%c0_11, %c0_12] : memref<1x128xf32, #tpu.memory_space<vmem>>, vector<1x128xf32>
      %14 = vector.broadcast %13 : vector<1x128xf32> to vector<8x128xf32>
      %15 = arith.addf %12, %14 : vector<8x128xf32>
      %cst_13 = arith.constant 0.000000e+00 : f32
      %16 = vector.broadcast %cst_13 : f32 to vector<8x128xf32>
      %17 = arith.maximumf %15, %16 : vector<8x128xf32>
      %c0_14 = arith.constant 0 : index
      %c0_15 = arith.constant 0 : index
      %18 = vector.load %arg5[%c0_14, %c0_15] : memref<128x128xf32, #tpu.memory_space<vmem>>, vector<128x128xf32>
      %cst_16 = arith.constant dense<0.000000e+00> : vector<8x128xf32>
      %19 = tpu.matmul %17, %18, %cst_16 {dimension_numbers = #tpu.dot_dimension_numbers<[1], [0], [0], [1], [0, 0, 1, 1], [], []>} : vector<8x128xf32>, vector<128x128xf32>, vector<8x128xf32> -> vector<8x128xf32>
      %c0_17 = arith.constant 0 : index
      %c0_18 = arith.constant 0 : index
      %20 = vector.load %arg6[%c0_17, %c0_18] : memref<1x128xf32, #tpu.memory_space<vmem>>, vector<1x128xf32>
      %21 = vector.broadcast %20 : vector<1x128xf32> to vector<8x128xf32>
      %22 = arith.addf %19, %21 : vector<8x128xf32>
      %cst_19 = arith.constant 0.000000e+00 : f32
      %23 = vector.broadcast %cst_19 : f32 to vector<8x128xf32>
      %24 = arith.maximumf %22, %23 : vector<8x128xf32>
      %25 = arith.mulf %24, %24 : vector<8x128xf32>
      %cst_20 = arith.constant dense<0.000000e+00> : vector<8xf32>
      %26 = vector.multi_reduction <add>, %25, %cst_20 [1] : vector<8x128xf32> to vector<8xf32>
      %27 = vector.shape_cast %26 : vector<8xf32> to vector<8x1xf32>
      %cst_21 = arith.constant 1.000000e-24 : f32
      %28 = vector.broadcast %cst_21 : f32 to vector<8x1xf32>
      %29 = arith.maximumf %27, %28 : vector<8x1xf32>
      %30 = math.rsqrt %29 : vector<8x1xf32>
      %31 = vector.broadcast %30 : vector<8x1xf32> to vector<8x128xf32>
      %32 = arith.mulf %24, %31 : vector<8x128xf32>
      %c0_22 = arith.constant 0 : index
      %c0_23 = arith.constant 0 : index
      %33 = vector.load %arg7[%c0_22, %c0_23] : memref<8x128xf32, #tpu.memory_space<vmem>>, vector<8x128xf32>
      tpu.vector_store %arg7[%c0_22, %c0_23], %32 {strides = array<i32>} : memref<8x128xf32, #tpu.memory_space<vmem>>, vector<8x128xf32>,
    } else {
    }
    return
  }
  func.func @transform_0(%arg0: i32, %arg1: i32) -> (i32, i32) {
    %c0_i32 = arith.constant 0 : i32
    return %arg0, %arg1 : i32, i32
  }
  func.func @transform_1(%arg0: i32, %arg1: i32) -> (i32, i32) {
    %c0_i32 = arith.constant 0 : i32
    %c0_i32_0 = arith.constant 0 : i32
    return %arg1, %c0_i32 : i32, i32
  }
  func.func @transform_2(%arg0: i32, %arg1: i32) -> (i32, i32) {
    %c0_i32 = arith.constant 0 : i32
    %c0_i32_0 = arith.constant 0 : i32
    %c0_i32_1 = arith.constant 0 : i32
    return %c0_i32, %c0_i32_0 : i32, i32
  }
  func.func @transform_3(%arg0: i32, %arg1: i32) -> (i32, i32) {
    %c0_i32 = arith.constant 0 : i32
    %c0_i32_0 = arith.constant 0 : i32
    %c0_i32_1 = arith.constant 0 : i32
    return %c0_i32, %c0_i32_0 : i32, i32
  }
  func.func @transform_4(%arg0: i32, %arg1: i32) -> (i32, i32) {
    %c0_i32 = arith.constant 0 : i32
    %c0_i32_0 = arith.constant 0 : i32
    %c0_i32_1 = arith.constant 0 : i32
    return %c0_i32, %c0_i32_0 : i32, i32
  }
  func.func @transform_5(%arg0: i32, %arg1: i32) -> (i32, i32) {
    %c0_i32 = arith.constant 0 : i32
    %c0_i32_0 = arith.constant 0 : i32
    return %arg0, %c0_i32 : i32, i32
  }
}

</mosaic_0001>

<llo_original>
// kernel: tpu_custom_call.1
$region0: #{tpu_custom_call.1}
  #allocation0 [shape = 'u32[]', space=smem, size = 0x4, offset = 0x4, fixed_abs, tag = 'smem constant byte address 0x4 - core index']
  #allocation1 [shape = 'u32[144,128]{1,0:T(1,128)}', space=vmem, size = 0x12000, scoped, tag = 'internal scratch']
  #allocation2 [shape = 'f32[8,128]{1,0:T(8,128)}', space=vmem, size = 0x1000, scoped, tag = 'scratch operand']
  %s0 = inlined_call_operand.hbm [shape: f32[8,1536], index: 0, kind: input, shape index: {}]
  %s1 = inlined_call_operand.hbm [shape: f32[1536,128], index: 1, kind: input, shape index: {}]
  %s2 = inlined_call_operand.vmem [shape: f32[1,128], index: 2, kind: input, shape index: {}]
  %s3 = inlined_call_operand.hbm [shape: f32[128,128], index: 3, kind: input, shape index: {}]
  %s4 = inlined_call_operand.vmem [shape: f32[1,128], index: 4, kind: input, shape index: {}]
  %s5 = inlined_call_operand.hbm [shape: f32[8,128], index: 5, kind: output, shape index: {}]
  %s6 = sld [smem:[#allocation0]]
  $region73: #{tpu_custom_call.1} parent=0
    _
  %s8 = ssub.s32 1, %s6
  %s9 = scalar_select 0, %s8, %s6
  $region1: #{tpu_custom_call.1} parent=0
    #allocation3 [shape = 'u8[49152]{0}', space=vmem, size = 0xc000, scoped, tag = 'input window, operand 0']
    #allocation4 [shape = 's32[2]{0}', space=sflag, size = 0x8, scoped, tag = 'scoped memory for tpu_custom_call.1']
    #allocation5 [shape = 's32[2]{0}', space=sflag, size = 0x8, scoped, tag = 'scoped memory for tpu_custom_call.1']
    #allocation6 [shape = 'u8[786432]{0}', space=vmem, size = 0xc0000, scoped, tag = 'input window, operand 1']
    #allocation7 [shape = 's32[2]{0}', space=sflag, size = 0x8, scoped, tag = 'scoped memory for tpu_custom_call.1']
    #allocation8 [shape = 'u8[65536]{0}', space=vmem, size = 0x10000, scoped, tag = 'input window, operand 3, single buffered']
    #allocation9 [shape = 'u8[4096]{0}', space=vmem, size = 0x1000, scoped, tag = 'output window, operand 0, single buffered']
    %10 = vsyncpa [#allocation4], 0
    %s11 = scalar_lea.sflag [#allocation4], 1
    %12 = vsyncpa %s11, 0
    %13 = vsyncpa [#allocation7], 0
    %s14 = scalar_lea.sflag [#allocation7], 1
    %15 = vsyncpa %s14, 0
    %16 = vsyncpa [#allocation5], 0
    loop: start=0, step=1, limit=4
    $region2: #{tpu_custom_call.1} parent=1 // loop_pre_header
      _
    $region3: #{tpu_custom_call.1} parent=1 // loop_header
      %s18 = sphi 0, %s22
      %p19 = scmp.ge.s32.totalorder %s18, 4
      %s25 = sphi 0, %s37
      %s26 = sphi 0, %s33
      %s27 = sphi 0, %s25
      %s28 = sphi 0, %s26
      %s29 = sphi 0, %s27
      %s30 = sphi 0, %s28
      %s42 = sphi 0, %s44
      %s45 = sphi 0, %s42
      %s46 = sphi 0, %s45
      %s62 = sphi 0, %s46
      %s68 = sphi 0, %s70
      %s71 = sphi 0, %s68
      %s72 = sphi 0, %s71
      %s88 = sphi 0, %s72
      %s92 = sphi 0, %s92
      %s94 = sphi 0, %s92
      %s95 = sphi 0, %s94
      %s109 = sphi 0, %s95
      %s113 = sphi 0, %s113
      %s115 = sphi 0, %s113
      %s116 = sphi 0, %s115
      %s130 = sphi 0, %s116
      %s134 = sphi 0, %s134
      %s136 = sphi 0, %s134
      %s137 = sphi 0, %s136
      %s151 = sphi 0, %s137
      %s157 = sphi 0, %s159
      %s160 = sphi 0, %s157
      %s161 = sphi 0, %s160
      %s177 = sphi 0, %s161
    $region4: #{tpu_custom_call.1} parent=1 // loop_header_branch
      %21 = sbr.rel (%p19) target = $region8
    $region5: #{tpu_custom_call.1} parent=1 // loop_body
      %s23 = ssub.s32 %s18, 1
      %s24 = ssub.s32 %s18, 2
      %s31 = sadd.s32 1, %s26
      %p32 = scmp.ge.s32.totalorder %s31, 2
      %s33 = scalar_select %p32, 0, %s31
      %s34 = sadd.s32 1, %s25
      %s35 = scalar_select %p32, %s34, %s25
      %p36 = scmp.ge.s32.totalorder %s35, 1
      %s37 = scalar_select %p36, 0, %s35
      %s38 = ssub.s32 %s25, %s37
      %s39 = ssub.s32 %s26, %s33
      %s40 = sor.u32 %s38, %s39
      %p41 = scmp.eq.s32.totalorder %s40, 0
      %s43 = sadd.s32 %s42, 1
      %s44 = scalar_select %p41, %s42, %s43
      %p47 = pneg %p41
      %p48 = scmp.eq.s32.totalorder %s18, 1
      %p49 = por %p47, %p48
      %p50 = scmp.ne.s32.totalorder %s42, %s45
      %p51 = scmp.eq.s32.totalorder %s18, 0
      %p52 = por %p50, %p51
      %p53 = scmp.ne.s32.totalorder %s42, %s45
      %p54 = scmp.eq.s32.totalorder %s23, 1
      %p55 = por %p53, %p54
      %p56 = scmp.ne.s32.totalorder %s45, %s46
      %p57 = scmp.eq.s32.totalorder %s23, 0
      %p58 = por %p56, %p57
      %p59 = scmp.ne.s32.totalorder %s45, %s46
      %p60 = scmp.eq.s32.totalorder %s24, 1
      %p61 = por %p59, %p60
      %p63 = scmp.ne.s32.totalorder %s46, %s62
      %p64 = scmp.eq.s32.totalorder %s24, 0
      %p65 = por %p63, %p64
      %s66 = ssub.s32 %s26, %s33
      %p67 = scmp.eq.s32.totalorder %s66, 0
      %s69 = sadd.s32 %s68, 1
      %s70 = scalar_select %p67, %s68, %s69
      %p73 = pneg %p67
      %p74 = scmp.eq.s32.totalorder %s18, 1
      %p75 = por %p73, %p74
      %p76 = scmp.ne.s32.totalorder %s68, %s71
      %p77 = scmp.eq.s32.totalorder %s18, 0
      %p78 = por %p76, %p77
      %p79 = scmp.ne.s32.totalorder %s68, %s71
      %p80 = scmp.eq.s32.totalorder %s23, 1
      %p81 = por %p79, %p80
      %p82 = scmp.ne.s32.totalorder %s71, %s72
      %p83 = scmp.eq.s32.totalorder %s23, 0
      %p84 = por %p82, %p83
      %p85 = scmp.ne.s32.totalorder %s71, %s72
      %p86 = scmp.eq.s32.totalorder %s24, 1
      %p87 = por %p85, %p86
      %p89 = scmp.ne.s32.totalorder %s72, %s88
      %p90 = scmp.eq.s32.totalorder %s24, 0
      %p91 = por %p89, %p90
      %s93 = sadd.s32 %s92, 1
      %p96 = scmp.eq.s32.totalorder %s18, 1
      %p97 = scmp.ne.s32.totalorder %s92, %s94
      %p98 = scmp.eq.s32.totalorder %s18, 0
      %p99 = por %p97, %p98
      %p100 = scmp.ne.s32.totalorder %s92, %s94
      %p101 = scmp.eq.s32.totalorder %s23, 1
      %p102 = por %p100, %p101
      %p103 = scmp.ne.s32.totalorder %s94, %s95
      %p104 = scmp.eq.s32.totalorder %s23, 0
      %p105 = por %p103, %p104
      %p106 = scmp.ne.s32.totalorder %s94, %s95
      %p107 = scmp.eq.s32.totalorder %s24, 1
      %p108 = por %p106, %p107
      %p110 = scmp.ne.s32.totalorder %s95, %s109
      %p111 = scmp.eq.s32.totalorder %s24, 0
      %p112 = por %p110, %p111
      %s114 = sadd.s32 %s113, 1
      %p117 = scmp.eq.s32.totalorder %s18, 1
      %p118 = scmp.ne.s32.totalorder %s113, %s115
      %p119 = scmp.eq.s32.totalorder %s18, 0
      %p120 = por %p118, %p119
      %p121 = scmp.ne.s32.totalorder %s113, %s115
      %p122 = scmp.eq.s32.totalorder %s23, 1
      %p123 = por %p121, %p122
      %p124 = scmp.ne.s32.totalorder %s115, %s116
      %p125 = scmp.eq.s32.totalorder %s23, 0
      %p126 = por %p124, %p125
      %p127 = scmp.ne.s32.totalorder %s115, %s116
      %p128 = scmp.eq.s32.totalorder %s24, 1
      %p129 = por %p127, %p128
      %p131 = scmp.ne.s32.totalorder %s116, %s130
      %p132 = scmp.eq.s32.totalorder %s24, 0
      %p133 = por %p131, %p132
      %s135 = sadd.s32 %s134, 1
      %p138 = scmp.eq.s32.totalorder %s18, 1
      %p139 = scmp.ne.s32.totalorder %s134, %s136
      %p140 = scmp.eq.s32.totalorder %s18, 0
      %p141 = por %p139, %p140
      %p142 = scmp.ne.s32.totalorder %s134, %s136
      %p143 = scmp.eq.s32.totalorder %s23, 1
      %p144 = por %p142, %p143
      %p145 = scmp.ne.s32.totalorder %s136, %s137
      %p146 = scmp.eq.s32.totalorder %s23, 0
      %p147 = por %p145, %p146
      %p148 = scmp.ne.s32.totalorder %s136, %s137
      %p149 = scmp.eq.s32.totalorder %s24, 1
      %p150 = por %p148, %p149
      %p152 = scmp.ne.s32.totalorder %s137, %s151
      %p153 = scmp.eq.s32.totalorder %s24, 0
      %p154 = por %p152, %p153
      %s155 = ssub.s32 %s25, %s37
      %p156 = scmp.eq.s32.totalorder %s155, 0
      %s158 = sadd.s32 %s157, 1
      %s159 = scalar_select %p156, %s157, %s158
      %p162 = pneg %p156
      %p163 = scmp.eq.s32.totalorder %s18, 1
      %p164 = por %p162, %p163
      %p165 = scmp.ne.s32.totalorder %s157, %s160
      %p166 = scmp.eq.s32.totalorder %s18, 0
      %p167 = por %p165, %p166
      %p168 = scmp.ne.s32.totalorder %s157, %s160
      %p169 = scmp.eq.s32.totalorder %s23, 1
      %p170 = por %p168, %p169
      %p171 = scmp.ne.s32.totalorder %s160, %s161
      %p172 = scmp.eq.s32.totalorder %s23, 0
      %p173 = por %p171, %p172
      %p174 = scmp.ne.s32.totalorder %s160, %s161
      %p175 = scmp.eq.s32.totalorder %s24, 1
      %p176 = por %p174, %p175
      %p178 = scmp.ne.s32.totalorder %s161, %s177
      %p179 = scmp.eq.s32.totalorder %s24, 0
      %p180 = por %p178, %p179
      %p181 = scmp.le.s32.totalorder 1, %s18
      %p182 = scmp.lt.s32.totalorder %s18, 3
      %p183 = pnand %p181, %p182
      %p184 = pneg %p183
      // Predicated region
      $region9: #{tpu_custom_call.1} parent=5 // pred_check
        _
      $region10: #{tpu_custom_call.1} parent=5 // pred_check_branch
        %186 = sbr.rel (%p183) target = $region12
      $region11: #{tpu_custom_call.1} parent=5 // pred_region
        %s187 = ssub.s32 %s18, 1
        // Predicated region
        $region13: #{tpu_custom_call.1} parent=11 // pred_check
          %p188 = pneg %p105
        $region14: #{tpu_custom_call.1} parent=11 // pred_check_branch
          %190 = sbr.rel (%p188) target = $region16
        $region15: #{tpu_custom_call.1} parent=11 // pred_region
          _
        $region16: #{tpu_custom_call.1} parent=11 // pred_fallthru
          _
        // Predicated region
        $region17: #{tpu_custom_call.1} parent=11 // pred_check
          %p191 = pneg %p126
        $region18: #{tpu_custom_call.1} parent=11 // pred_check_branch
          %193 = sbr.rel (%p191) target = $region20
        $region19: #{tpu_custom_call.1} parent=11 // pred_region
          %s195 = ssub.s32 2048, 2048
          %196 = vsyncadd [#allocation7], %s195
          %s197 = sshll.u32 [#allocation8], 4
          %s198 = int_to_ptr.vmem [resolvable:$true] %s197
          %203 = dma.hbm_to_vmem [thread:$0]  %s3, 2048, %s198, [#allocation7], 128, 128, 8
        $region20: #{tpu_custom_call.1} parent=11 // pred_fallthru
          _
        // Predicated region
        $region21: #{tpu_custom_call.1} parent=11 // pred_check
          %p204 = pneg %p147
        $region22: #{tpu_custom_call.1} parent=11 // pred_check_branch
          %206 = sbr.rel (%p204) target = $region24
        $region23: #{tpu_custom_call.1} parent=11 // pred_region
          _
        $region24: #{tpu_custom_call.1} parent=11 // pred_fallthru
          _
      $region12: #{tpu_custom_call.1} parent=5 // pred_fallthru
        _
      %p207 = scmp.lt.s32.totalorder %s18, 2
      // Predicated region
      $region25: #{tpu_custom_call.1} parent=5 // pred_check
        %p208 = pneg %p207
      $region26: #{tpu_custom_call.1} parent=5 // pred_check_branch
        %210 = sbr.rel (%p208) target = $region28
      $region27: #{tpu_custom_call.1} parent=5 // pred_region
        // Predicated region
        $region29: #{tpu_custom_call.1} parent=27 // pred_check
          %p211 = pneg %p52
        $region30: #{tpu_custom_call.1} parent=27 // pred_check_branch
          %213 = sbr.rel (%p211) target = $region32
        $region31: #{tpu_custom_call.1} parent=27 // pred_region
          %s214 = sand.u32 %s42, 1
          %s215 = scalar_lea.sflag [#allocation4], %s214
          %s216 = sand.u32 %s42, 1
          %s217 = smul.addr %s216, 48
          %s218 = scalar_lea.vmem [#allocation3], %s217
          %s219 = smul.u32 6, %s26
          %s221 = ssub.s32 768, 768
          %222 = vsyncadd %s215, %s221
          %s223 = smul.addr %s25, 12
          %s224 = sadd.s32 %s219, %s223
          %s225 = smul.addr %s224, 128
          %s226 = scalar_lea.hbm %s0, %s225
          %s228 = sshll.u32 %s218, 4
          %s229 = int_to_ptr.vmem [resolvable:$true] %s228
          %231 = dma.hbm_to_vmem [thread:$0]  %s226, 768, %s229, %s215
        $region32: #{tpu_custom_call.1} parent=27 // pred_fallthru
          _
        // Predicated region
        $region33: #{tpu_custom_call.1} parent=27 // pred_check
          %p232 = pneg %p78
        $region34: #{tpu_custom_call.1} parent=27 // pred_check_branch
          %234 = sbr.rel (%p232) target = $region36
        $region35: #{tpu_custom_call.1} parent=27 // pred_region
          %s235 = sand.u32 %s18, 1
          %s236 = scalar_lea.sflag [#allocation7], %s235
          %s237 = sand.u32 %s68, 1
          %s238 = smul.addr %s237, 768
          %s239 = scalar_lea.vmem [#allocation6], %s238
          %s240 = smul.u32 96, %s26
          %s242 = ssub.s32 12288, 12288
          %243 = vsyncadd %s236, %s242
          %s244 = smul.addr %s240, 128
          %s245 = scalar_lea.hbm %s1, %s244
          %s246 = sshll.u32 %s239, 4
          %s247 = int_to_ptr.vmem [resolvable:$true] %s246
          %252 = dma.hbm_to_vmem [thread:$0]  %s245, 12288, %s247, %s236, 128, 128, 8
        $region36: #{tpu_custom_call.1} parent=27 // pred_fallthru
          _
      $region28: #{tpu_custom_call.1} parent=5 // pred_fallthru
        _
      %p253 = scmp.le.s32.totalorder 1, %s18
      %p254 = scmp.lt.s32.totalorder %s18, 3
      %p255 = pnand %p253, %p254
      %p256 = pneg %p255
      // Predicated region
      $region37: #{tpu_custom_call.1} parent=5 // pred_check
        _
      $region38: #{tpu_custom_call.1} parent=5 // pred_check_branch
        %258 = sbr.rel (%p255) target = $region40
      $region39: #{tpu_custom_call.1} parent=5 // pred_region
        %s259 = ssub.s32 %s18, 1
        %s260 = sand.u32 %s45, 1
        %s261 = scalar_lea.sflag [#allocation4], %s260
        %s262 = sand.u32 %s45, 1
        %s263 = smul.addr %s262, 48
        %s264 = scalar_lea.vmem [#allocation3], %s263
        // Predicated region
        $region41: #{tpu_custom_call.1} parent=39 // pred_check
          %p265 = pneg %p58
        $region42: #{tpu_custom_call.1} parent=39 // pred_check_branch
          %267 = sbr.rel (%p265) target = $region44
        $region43: #{tpu_custom_call.1} parent=39 // pred_region
          %268 = dma.done %s261, 768
        $region44: #{tpu_custom_call.1} parent=39 // pred_fallthru
          _
        %s269 = sand.u32 %s23, 1
        %s270 = scalar_lea.sflag [#allocation7], %s269
        %s271 = sand.u32 %s71, 1
        %s272 = smul.addr %s271, 768
        %s273 = scalar_lea.vmem [#allocation6], %s272
        // Predicated region
        $region45: #{tpu_custom_call.1} parent=39 // pred_check
          %p274 = pneg %p84
        $region46: #{tpu_custom_call.1} parent=39 // pred_check_branch
          %276 = sbr.rel (%p274) target = $region48
        $region47: #{tpu_custom_call.1} parent=39 // pred_region
          %277 = dma.done %s270, 12288
        $region48: #{tpu_custom_call.1} parent=39 // pred_fallthru
          _
        // Predicated region
        $region49: #{tpu_custom_call.1} parent=39 // pred_check
          %p278 = pneg %p126
        $region50: #{tpu_custom_call.1} parent=39 // pred_check_branch
          %280 = sbr.rel (%p278) target = $region52
        $region51: #{tpu_custom_call.1} parent=39 // pred_region
          %281 = dma.done [#allocation7], 2048
        $region52: #{tpu_custom_call.1} parent=39 // pred_fallthru
          _
        %s282 = sand.u32 %s45, 1
        %s283 = scalar_lea.sflag [#allocation4], %s282
        %s284 = sand.u32 %s45, 1
        %s285 = smul.addr %s284, 48
        %s286 = scalar_lea.vmem [#allocation3], %s285
        %p287 = pneg %p58
        %p288 = pneg %p55
        %s289 = sand.u32 %s23, 1
        %s290 = scalar_lea.sflag [#allocation7], %s289
        %s291 = sand.u32 %s71, 1
        %s292 = smul.addr %s291, 768
        %s293 = scalar_lea.vmem [#allocation6], %s292
        %p294 = pneg %p84
        %p295 = pneg %p81
        %p296 = pneg %p105
        %p297 = pneg %p102
        %p298 = pneg %p126
        %p299 = pneg %p123
        %p300 = pneg %p147
        %p301 = pneg %p144
        %p302 = pneg %p173
        %p303 = pneg %p170
        %s304 = smul.u32 6, %s28
        %s305 = smul.u32 96, %s28
        %p306 = scmp.eq.s32.totalorder %s28, 0
        // Predicated region
        $region53: #{tpu_custom_call.1} parent=39 // pred_check
          %p307 = pneg %p306
        $region54: #{tpu_custom_call.1} parent=39 // pred_check_branch
          %309 = sbr.rel (%p307) target = $region56
        $region55: #{tpu_custom_call.1} parent=39 // pred_region
          %310 = vst [vmem:[#allocation2] sm:$0xff] 0.0
        $region56: #{tpu_custom_call.1} parent=39 // pred_fallthru
          _
        %v311 = vld [vmem:[%s264] sm:$0xff]
        %v312 = vld [vmem:[%s264 + $0x8] sm:$0xff]
        %v313 = vld [vmem:[%s264 + $0x10] sm:$0xff]
        %v314 = vld [vmem:[%s264 + $0x18] sm:$0xff]
        %v315 = vld [vmem:[%s264 + $0x20] sm:$0xff]
        %v316 = vld [vmem:[%s264 + $0x28] sm:$0xff]
        %v317 = vld [vmem:[#allocation2] sm:$0xff]
        %v318 = vld [vmem:[%s273] sm:$0xff]
        %v319 = vld [vmem:[%s273 + $0x8] sm:$0xff]
        %v320 = vld [vmem:[%s273 + $0x10] sm:$0xff]
        %v321 = vld [vmem:[%s273 + $0x18] sm:$0xff]
        %v322 = vld [vmem:[%s273 + $0x20] sm:$0xff]
        %v323 = vld [vmem:[%s273 + $0x28] sm:$0xff]
        %v324 = vld [vmem:[%s273 + $0x30] sm:$0xff]
        %v325 = vld [vmem:[%s273 + $0x38] sm:$0xff]
        %v326 = vld [vmem:[%s273 + $0x40] sm:$0xff]
        %v327 = vld [vmem:[%s273 + $0x48] sm:$0xff]
        %v328 = vld [vmem:[%s273 + $0x50] sm:$0xff]
        %v329 = vld [vmem:[%s273 + $0x58] sm:$0xff]
        %v330 = vld [vmem:[%s273 + $0x60] sm:$0xff]
        %v331 = vld [vmem:[%s273 + $0x68] sm:$0xff]
        %v332 = vld [vmem:[%s273 + $0x70] sm:$0xff]
        %v333 = vld [vmem:[%s273 + $0x78] sm:$0xff]
        %v334 = vld [vmem:[%s273 + $0x80] sm:$0xff]
        %v335 = vld [vmem:[%s273 + $0x88] sm:$0xff]
        %v336 = vld [vmem:[%s273 + $0x90] sm:$0xff]
        %v337 = vld [vmem:[%s273 + $0x98] sm:$0xff]
        %v338 = vld [vmem:[%s273 + $0xa0] sm:$0xff]
        %v339 = vld [vmem:[%s273 + $0xa8] sm:$0xff]
        %v340 = vld [vmem:[%s273 + $0xb0] sm:$0xff]
        %v341 = vld [vmem:[%s273 + $0xb8] sm:$0xff]
        %v342 = vld [vmem:[%s273 + $0xc0] sm:$0xff]
        %v343 = vld [vmem:[%s273 + $0xc8] sm:$0xff]
        %v344 = vld [vmem:[%s273 + $0xd0] sm:$0xff]
        %v345 = vld [vmem:[%s273 + $0xd8] sm:$0xff]
        %v346 = vld [vmem:[%s273 + $0xe0] sm:$0xff]
        %v347 = vld [vmem:[%s273 + $0xe8] sm:$0xff]
        %v348 = vld [vmem:[%s273 + $0xf0] sm:$0xff]
        %v349 = vld [vmem:[%s273 + $0xf8] sm:$0xff]
        %v350 = vld [vmem:[%s273 + $0x100] sm:$0xff]
        %v351 = vld [vmem:[%s273 + $0x108] sm:$0xff]
        %v352 = vld [vmem:[%s273 + $0x110] sm:$0xff]
        %v353 = vld [vmem:[%s273 + $0x118] sm:$0xff]
        %v354 = vld [vmem:[%s273 + $0x120] sm:$0xff]
        %v355 = vld [vmem:[%s273 + $0x128] sm:$0xff]
        %v356 = vld [vmem:[%s273 + $0x130] sm:$0xff]
        %v357 = vld [vmem:[%s273 + $0x138] sm:$0xff]
        %v358 = vld [vmem:[%s273 + $0x140] sm:$0xff]
        %v359 = vld [vmem:[%s273 + $0x148] sm:$0xff]
        %v360 = vld [vmem:[%s273 + $0x150] sm:$0xff]
        %v361 = vld [vmem:[%s273 + $0x158] sm:$0xff]
        %v362 = vld [vmem:[%s273 + $0x160] sm:$0xff]
        %v363 = vld [vmem:[%s273 + $0x168] sm:$0xff]
        %v364 = vld [vmem:[%s273 + $0x170] sm:$0xff]
        %v365 = vld [vmem:[%s273 + $0x178] sm:$0xff]
        %v366 = vld [vmem:[%s273 + $0x180] sm:$0xff]
        %v367 = vld [vmem:[%s273 + $0x188] sm:$0xff]
        %v368 = vld [vmem:[%s273 + $0x190] sm:$0xff]
        %v369 = vld [vmem:[%s273 + $0x198] sm:$0xff]
        %v370 = vld [vmem:[%s273 + $0x1a0] sm:$0xff]
        %v371 = vld [vmem:[%s273 + $0x1a8] sm:$0xff]
        %v372 = vld [vmem:[%s273 + $0x1b0] sm:$0xff]
        %v373 = vld [vmem:[%s273 + $0x1b8] sm:$0xff]
        %v374 = vld [vmem:[%s273 + $0x1c0] sm:$0xff]
        %v375 = vld [vmem:[%s273 + $0x1c8] sm:$0xff]
        %v376 = vld [vmem:[%s273 + $0x1d0] sm:$0xff]
        %v377 = vld [vmem:[%s273 + $0x1d8] sm:$0xff]
        %v378 = vld [vmem:[%s273 + $0x1e0] sm:$0xff]
        %v379 = vld [vmem:[%s273 + $0x1e8] sm:$0xff]
        %v380 = vld [vmem:[%s273 + $0x1f0] sm:$0xff]
        %v381 = vld [vmem:[%s273 + $0x1f8] sm:$0xff]
        %v382 = vld [vmem:[%s273 + $0x200] sm:$0xff]
        %v383 = vld [vmem:[%s273 + $0x208] sm:$0xff]
        %v384 = vld [vmem:[%s273 + $0x210] sm:$0xff]
        %v385 = vld [vmem:[%s273 + $0x218] sm:$0xff]
        %v386 = vld [vmem:[%s273 + $0x220] sm:$0xff]
        %v387 = vld [vmem:[%s273 + $0x228] sm:$0xff]
        %v388 = vld [vmem:[%s273 + $0x230] sm:$0xff]
        %v389 = vld [vmem:[%s273 + $0x238] sm:$0xff]
        %v390 = vld [vmem:[%s273 + $0x240] sm:$0xff]
        %v391 = vld [vmem:[%s273 + $0x248] sm:$0xff]
        %v392 = vld [vmem:[%s273 + $0x250] sm:$0xff]
        %v393 = vld [vmem:[%s273 + $0x258] sm:$0xff]
        %v394 = vld [vmem:[%s273 + $0x260] sm:$0xff]
        %v395 = vld [vmem:[%s273 + $0x268] sm:$0xff]
        %v396 = vld [vmem:[%s273 + $0x270] sm:$0xff]
        %v397 = vld [vmem:[%s273 + $0x278] sm:$0xff]
        %v398 = vld [vmem:[%s273 + $0x280] sm:$0xff]
        %v399 = vld [vmem:[%s273 + $0x288] sm:$0xff]
        %v400 = vld [vmem:[%s273 + $0x290] sm:$0xff]
        %v401 = vld [vmem:[%s273 + $0x298] sm:$0xff]
        %v402 = vld [vmem:[%s273 + $0x2a0] sm:$0xff]
        %v403 = vld [vmem:[%s273 + $0x2a8] sm:$0xff]
        %v404 = vld [vmem:[%s273 + $0x2b0] sm:$0xff]
        %v405 = vld [vmem:[%s273 + $0x2b8] sm:$0xff]
        %v406 = vld [vmem:[%s273 + $0x2c0] sm:$0xff]
        %v407 = vld [vmem:[%s273 + $0x2c8] sm:$0xff]
        %v408 = vld [vmem:[%s273 + $0x2d0] sm:$0xff]
        %v409 = vld [vmem:[%s273 + $0x2d8] sm:$0xff]
        %v410 = vld [vmem:[%s273 + $0x2e0] sm:$0xff]
        %v411 = vld [vmem:[%s273 + $0x2e8] sm:$0xff]
        %v412 = vld [vmem:[%s273 + $0x2f0] sm:$0xff]
        %v413 = vld [vmem:[%s273 + $0x2f8] sm:$0xff]
        %414 = vmatprep.subr.mxu0 0.0
        %415 = vmatpush1.msra.mxu0 %v333
        %416 = vmatprep.subr.mxu0 0.0
        %417 = vmatpush1.msra.mxu0 %v332
        %418 = vmatprep.subr.mxu0 0.0
        %419 = vmatpush1.msra.mxu0 %v331
        %420 = vmatprep.subr.mxu0 0.0
        %421 = vmatpush1.msra.mxu0 %v330
        %422 = vmatprep.subr.mxu0 0.0
        %423 = vmatpush1.msra.mxu0 %v329
        %424 = vmatprep.subr.mxu0 0.0
        %425 = vmatpush1.msra.mxu0 %v328
        %426 = vmatprep.subr.mxu0 0.0
        %427 = vmatpush1.msra.mxu0 %v327
        %428 = vmatprep.subr.mxu0 0.0
        %429 = vmatpush1.msra.mxu0 %v326
        %430 = vmatprep.subr.mxu0 0.0
        %431 = vmatpush1.msra.mxu0 %v325
        %432 = vmatprep.subr.mxu0 0.0
        %433 = vmatpush1.msra.mxu0 %v324
        %434 = vmatprep.subr.mxu0 0.0
        %435 = vmatpush1.msra.mxu0 %v323
        %436 = vmatprep.subr.mxu0 0.0
        %437 = vmatpush1.msra.mxu0 %v322
        %438 = vmatprep.subr.mxu0 0.0
        %439 = vmatpush1.msra.mxu0 %v321
        %440 = vmatprep.subr.mxu0 0.0
        %441 = vmatpush1.msra.mxu0 %v320
        %442 = vmatprep.subr.mxu0 0.0
        %443 = vmatpush1.msra.mxu0 %v319
        %444 = vmatprep.subr.mxu0 0.0
        %445 = vmatpush1.msra.mxu0 %v318
        %446 = vmatprep.subr.mxu0 0.0
        %447 = vmatpush2.msra.mxu0 %v349
        %448 = vmatprep.subr.mxu0 0.0
        %449 = vmatpush2.msra.mxu0 %v348
        %450 = vmatprep.subr.mxu0 0.0
        %451 = vmatpush2.msra.mxu0 %v347
        %452 = vmatprep.subr.mxu0 0.0
        %453 = vmatpush2.msra.mxu0 %v346
        %454 = vmatprep.subr.mxu0 0.0
        %455 = vmatpush2.msra.mxu0 %v345
        %456 = vmatprep.subr.mxu0 0.0
        %457 = vmatpush2.msra.mxu0 %v344
        %458 = vmatprep.subr.mxu0 0.0
        %459 = vmatpush2.msra.mxu0 %v343
        %460 = vmatprep.subr.mxu0 0.0
        %461 = vmatpush2.msra.mxu0 %v342
        %462 = vmatprep.subr.mxu0 0.0
        %463 = vmatpush2.msra.mxu0 %v341
        %464 = vmatprep.subr.mxu0 0.0
        %465 = vmatpush2.msra.mxu0 %v340
        %466 = vmatprep.subr.mxu0 0.0
        %467 = vmatpush2.msra.mxu0 %v339
        %468 = vmatprep.subr.mxu0 0.0
        %469 = vmatpush2.msra.mxu0 %v338
        %470 = vmatprep.subr.mxu0 0.0
        %471 = vmatpush2.msra.mxu0 %v337
        %472 = vmatprep.subr.mxu0 0.0
        %473 = vmatpush2.msra.mxu0 %v336
        %474 = vmatprep.subr.mxu0 0.0
        %475 = vmatpush2.msra.mxu0 %v335
        %476 = vmatprep.subr.mxu0 0.0
        %477 = vmatpush2.msra.mxu0 %v334
        %478 = vmatprep.mubr.f32.mxu0 %v312
        %479 = vmatmul.mubr.f32.gmra.mxu0 %v311
        %v480 = vpop.f32.mrf.mxu0
        %v481 = vadd.f32 0.0, %v480
        %v482 = vpop.f32.mrf.mxu0
        %483 = vdwg.mxu0
        %484 = vmatprep.subr.mxu0 0.0
        %485 = vmatpush1.msra.mxu0 %v365
        %486 = vmatprep.subr.mxu0 0.0
        %487 = vmatpush1.msra.mxu0 %v364
        %488 = vmatprep.subr.mxu0 0.0
        %489 = vmatpush1.msra.mxu0 %v363
        %490 = vmatprep.subr.mxu0 0.0
        %491 = vmatpush1.msra.mxu0 %v362
        %492 = vmatprep.subr.mxu0 0.0
        %493 = vmatpush1.msra.mxu0 %v361
        %494 = vmatprep.subr.mxu0 0.0
        %495 = vmatpush1.msra.mxu0 %v360
        %496 = vmatprep.subr.mxu0 0.0
        %497 = vmatpush1.msra.mxu0 %v359
        %498 = vmatprep.subr.mxu0 0.0
        %499 = vmatpush1.msra.mxu0 %v358
        %500 = vmatprep.subr.mxu0 0.0
        %501 = vmatpush1.msra.mxu0 %v357
        %502 = vmatprep.subr.mxu0 0.0
        %503 = vmatpush1.msra.mxu0 %v356
        %504 = vmatprep.subr.mxu0 0.0
        %505 = vmatpush1.msra.mxu0 %v355
        %506 = vmatprep.subr.mxu0 0.0
        %507 = vmatpush1.msra.mxu0 %v354
        %508 = vmatprep.subr.mxu0 0.0
        %509 = vmatpush1.msra.mxu0 %v353
        %510 = vmatprep.subr.mxu0 0.0
        %511 = vmatpush1.msra.mxu0 %v352
        %512 = vmatprep.subr.mxu0 0.0
        %513 = vmatpush1.msra.mxu0 %v351
        %514 = vmatprep.subr.mxu0 0.0
        %515 = vmatpush1.msra.mxu0 %v350
        %516 = vmatprep.subr.mxu0 0.0
        %517 = vmatpush2.msra.mxu0 %v381
        %518 = vmatprep.subr.mxu0 0.0
        %519 = vmatpush2.msra.mxu0 %v380
        %520 = vmatprep.subr.mxu0 0.0
        %521 = vmatpush2.msra.mxu0 %v379
        %522 = vmatprep.subr.mxu0 0.0
        %523 = vmatpush2.msra.mxu0 %v378
        %524 = vmatprep.subr.mxu0 0.0
        %525 = vmatpush2.msra.mxu0 %v377
        %526 = vmatprep.subr.mxu0 0.0
        %527 = vmatpush2.msra.mxu0 %v376
        %528 = vmatprep.subr.mxu0 0.0
        %529 = vmatpush2.msra.mxu0 %v375
        %530 = vmatprep.subr.mxu0 0.0
        %531 = vmatpush2.msra.mxu0 %v374
        %532 = vmatprep.subr.mxu0 0.0
        %533 = vmatpush2.msra.mxu0 %v373
        %534 = vmatprep.subr.mxu0 0.0
        %535 = vmatpush2.msra.mxu0 %v372
        %536 = vmatprep.subr.mxu0 0.0
        %537 = vmatpush2.msra.mxu0 %v371
        %538 = vmatprep.subr.mxu0 0.0
        %539 = vmatpush2.msra.mxu0 %v370
        %540 = vmatprep.subr.mxu0 0.0
        %541 = vmatpush2.msra.mxu0 %v369
        %542 = vmatprep.subr.mxu0 0.0
        %543 = vmatpush2.msra.mxu0 %v368
        %544 = vmatprep.subr.mxu0 0.0
        %545 = vmatpush2.msra.mxu0 %v367
        %546 = vmatprep.subr.mxu0 0.0
        %547 = vmatpush2.msra.mxu0 %v366
        %548 = vmatprep.mubr.f32.mxu0 %v314
        %549 = vmatmul.mubr.f32.gmra.mxu0 %v313
        %v550 = vpop.f32.mrf.mxu0
        %v551 = vadd.f32 %v481, %v550
        %v552 = vpop.f32.mrf.mxu0
        %553 = vdwg.mxu0
        %554 = vmatprep.subr.mxu0 0.0
        %555 = vmatpush1.msra.mxu0 %v397
        %556 = vmatprep.subr.mxu0 0.0
        %557 = vmatpush1.msra.mxu0 %v396
        %558 = vmatprep.subr.mxu0 0.0
        %559 = vmatpush1.msra.mxu0 %v395
        %560 = vmatprep.subr.mxu0 0.0
        %561 = vmatpush1.msra.mxu0 %v394
        %562 = vmatprep.subr.mxu0 0.0
        %563 = vmatpush1.msra.mxu0 %v393
        %564 = vmatprep.subr.mxu0 0.0
        %565 = vmatpush1.msra.mxu0 %v392
        %566 = vmatprep.subr.mxu0 0.0
        %567 = vmatpush1.msra.mxu0 %v391
        %568 = vmatprep.subr.mxu0 0.0
        %569 = vmatpush1.msra.mxu0 %v390
        %570 = vmatprep.subr.mxu0 0.0
        %571 = vmatpush1.msra.mxu0 %v389
        %572 = vmatprep.subr.mxu0 0.0
        %573 = vmatpush1.msra.mxu0 %v388
        %574 = vmatprep.subr.mxu0 0.0
        %575 = vmatpush1.msra.mxu0 %v387
        %576 = vmatprep.subr.mxu0 0.0
        %577 = vmatpush1.msra.mxu0 %v386
        %578 = vmatprep.subr.mxu0 0.0
        %579 = vmatpush1.msra.mxu0 %v385
        %580 = vmatprep.subr.mxu0 0.0
        %581 = vmatpush1.msra.mxu0 %v384
        %582 = vmatprep.subr.mxu0 0.0
        %583 = vmatpush1.msra.mxu0 %v383
        %584 = vmatprep.subr.mxu0 0.0
        %585 = vmatpush1.msra.mxu0 %v382
        %586 = vmatprep.subr.mxu0 0.0
        %587 = vmatpush2.msra.mxu0 %v413
        %588 = vmatprep.subr.mxu0 0.0
        %589 = vmatpush2.msra.mxu0 %v412
        %590 = vmatprep.subr.mxu0 0.0
        %591 = vmatpush2.msra.mxu0 %v411
        %592 = vmatprep.subr.mxu0 0.0
        %593 = vmatpush2.msra.mxu0 %v410
        %594 = vmatprep.subr.mxu0 0.0
        %595 = vmatpush2.msra.mxu0 %v409
        %596 = vmatprep.subr.mxu0 0.0
        %597 = vmatpush2.msra.mxu0 %v408
        %598 = vmatprep.subr.mxu0 0.0
        %599 = vmatpush2.msra.mxu0 %v407
        %600 = vmatprep.subr.mxu0 0.0
        %601 = vmatpush2.msra.mxu0 %v406
        %602 = vmatprep.subr.mxu0 0.0
        %603 = vmatpush2.msra.mxu0 %v405
        %604 = vmatprep.subr.mxu0 0.0
        %605 = vmatpush2.msra.mxu0 %v404
        %606 = vmatprep.subr.mxu0 0.0
        %607 = vmatpush2.msra.mxu0 %v403
        %608 = vmatprep.subr.mxu0 0.0
        %609 = vmatpush2.msra.mxu0 %v402
        %610 = vmatprep.subr.mxu0 0.0
        %611 = vmatpush2.msra.mxu0 %v401
        %612 = vmatprep.subr.mxu0 0.0
        %613 = vmatpush2.msra.mxu0 %v400
        %614 = vmatprep.subr.mxu0 0.0
        %615 = vmatpush2.msra.mxu0 %v399
        %616 = vmatprep.subr.mxu0 0.0
        %617 = vmatpush2.msra.mxu0 %v398
        %618 = vmatprep.mubr.f32.mxu0 %v316
        %619 = vmatmul.mubr.f32.gmra.mxu0 %v315
        %v620 = vpop.f32.mrf.mxu0
        %v621 = vadd.f32 %v551, %v620
        %v622 = vpop.f32.mrf.mxu0
        %623 = vdwg.mxu0
        %v624 = vadd.f32 %v317, %v621
        %625 = vst [vmem:[#allocation2] sm:$0xff] %v624
        %p626 = scmp.eq.s32.totalorder %s28, 1
        // Predicated region
        $region57: #{tpu_custom_call.1} parent=39 // pred_check
          %p627 = pneg %p626
        $region58: #{tpu_custom_call.1} parent=39 // pred_check_branch
          %629 = sbr.rel (%p627) target = $region60
        $region59: #{tpu_custom_call.1} parent=39 // pred_region
          %v630 = vld [vmem:[#allocation2] sm:$0xff]
          %v631 = vld [vmem:[%s2] sm:$0x1]
          %v633 = vlaneseq
          %v634 = vshrl.u32 %v633, 7
          %v635 = vsub.s32 0, %v634
          %v636 = vrot.slane %v631, %v635
          %v638 = vadd.f32 %v630, %v636
          %v639 = vmax.f32 %v638, 0.0
          %v640 = vld [vmem:[#allocation8] sm:$0xff]
          %v641 = vld [vmem:[#allocation8 + $0x8] sm:$0xff]
          %v642 = vld [vmem:[#allocation8 + $0x10] sm:$0xff]
          %v643 = vld [vmem:[#allocation8 + $0x18] sm:$0xff]
          %v644 = vld [vmem:[#allocation8 + $0x20] sm:$0xff]
          %v645 = vld [vmem:[#allocation8 + $0x28] sm:$0xff]
          %v646 = vld [vmem:[#allocation8 + $0x30] sm:$0xff]
          %v647 = vld [vmem:[#allocation8 + $0x38] sm:$0xff]
          %v648 = vld [vmem:[#allocation8 + $0x40] sm:$0xff]
          %v649 = vld [vmem:[#allocation8 + $0x48] sm:$0xff]
          %v650 = vld [vmem:[#allocation8 + $0x50] sm:$0xff]
          %v651 = vld [vmem:[#allocation8 + $0x58] sm:$0xff]
          %v652 = vld [vmem:[#allocation8 + $0x60] sm:$0xff]
          %v653 = vld [vmem:[#allocation8 + $0x68] sm:$0xff]
          %v654 = vld [vmem:[#allocation8 + $0x70] sm:$0xff]
          %v655 = vld [vmem:[#allocation8 + $0x78] sm:$0xff]
          %v656 = vld [vmem:[%s4] sm:$0x1]
          %v658 = vlaneseq
          %v659 = vshrl.u32 %v658, 7
          %v660 = vsub.s32 0, %v659
          %v661 = vrot.slane %v656, %v660
          %663 = vmatprep.subr.mxu0 0.0
          %664 = vmatpush1.msra.mxu0 %v655
          %665 = vmatprep.subr.mxu0 0.0
          %666 = vmatpush1.msra.mxu0 %v654
          %667 = vmatprep.subr.mxu0 0.0
          %668 = vmatpush1.msra.mxu0 %v653
          %669 = vmatprep.subr.mxu0 0.0
          %670 = vmatpush1.msra.mxu0 %v652
          %671 = vmatprep.subr.mxu0 0.0
          %672 = vmatpush1.msra.mxu0 %v651
          %673 = vmatprep.subr.mxu0 0.0
          %674 = vmatpush1.msra.mxu0 %v650
          %675 = vmatprep.subr.mxu0 0.0
          %676 = vmatpush1.msra.mxu0 %v649
          %677 = vmatprep.subr.mxu0 0.0
          %678 = vmatpush1.msra.mxu0 %v648
          %679 = vmatprep.subr.mxu0 0.0
          %680 = vmatpush1.msra.mxu0 %v647
          %681 = vmatprep.subr.mxu0 0.0
          %682 = vmatpush1.msra.mxu0 %v646
          %683 = vmatprep.subr.mxu0 0.0
          %684 = vmatpush1.msra.mxu0 %v645
          %685 = vmatprep.subr.mxu0 0.0
          %686 = vmatpush1.msra.mxu0 %v644
          %687 = vmatprep.subr.mxu0 0.0
          %688 = vmatpush1.msra.mxu0 %v643
          %689 = vmatprep.subr.mxu0 0.0
          %690 = vmatpush1.msra.mxu0 %v642
          %691 = vmatprep.subr.mxu0 0.0
          %692 = vmatpush1.msra.mxu0 %v641
          %693 = vmatprep.subr.mxu0 0.0
          %694 = vmatpush1.msra.mxu0 %v640
          %695 = vmatprep.subr.mxu0 0.0
          %696 = vmatpush2.msra.mxu0 0.0
          %697 = vmatprep.subr.mxu0 0.0
          %698 = vmatpush2.msra.mxu0 0.0
          %699 = vmatprep.subr.mxu0 0.0
          %700 = vmatpush2.msra.mxu0 0.0
          %701 = vmatprep.subr.mxu0 0.0
          %702 = vmatpush2.msra.mxu0 0.0
          %703 = vmatprep.subr.mxu0 0.0
          %704 = vmatpush2.msra.mxu0 0.0
          %705 = vmatprep.subr.mxu0 0.0
          %706 = vmatpush2.msra.mxu0 0.0
          %707 = vmatprep.subr.mxu0 0.0
          %708 = vmatpush2.msra.mxu0 0.0
          %709 = vmatprep.subr.mxu0 0.0
          %710 = vmatpush2.msra.mxu0 0.0
          %711 = vmatprep.subr.mxu0 0.0
          %712 = vmatpush2.msra.mxu0 0.0
          %713 = vmatprep.subr.mxu0 0.0
          %714 = vmatpush2.msra.mxu0 0.0
          %715 = vmatprep.subr.mxu0 0.0
          %716 = vmatpush2.msra.mxu0 0.0
          %717 = vmatprep.subr.mxu0 0.0
          %718 = vmatpush2.msra.mxu0 0.0
          %719 = vmatprep.subr.mxu0 0.0
          %720 = vmatpush2.msra.mxu0 0.0
          %721 = vmatprep.subr.mxu0 0.0
          %722 = vmatpush2.msra.mxu0 0.0
          %723 = vmatprep.subr.mxu0 0.0
          %724 = vmatpush2.msra.mxu0 0.0
          %725 = vmatprep.subr.mxu0 0.0
          %726 = vmatpush2.msra.mxu0 0.0
          %727 = vmatprep.mubr.f32.mxu0 0.0
          %728 = vmatmul.mubr.f32.gmra.mxu0 %v639
          %v729 = vpop.f32.mrf.mxu0
          %v730 = vadd.f32 %v661, %v729
          %v731 = vpop.f32.mrf.mxu0
          %732 = vdwg.mxu0
          %v733 = vmax.f32 %v730, 0.0
          %v734 = vmul.f32 %v733, %v733
          %735 = vadd.xlane.f32.xlu0 %v734
          %v736 = vpop.xlane.xlu0 %735
          %v737 = vmax.f32 %v736, 1e-24
          %v738 = vrsqrt.pop %v737
          %v739 = vmul.f32 %v733, %v738
          %740 = vst [vmem:[#allocation9] sm:$0xff] %v739
        $region60: #{tpu_custom_call.1} parent=39 // pred_fallthru
          _
        // Predicated region
        $region61: #{tpu_custom_call.1} parent=39 // pred_check
          %p741 = pneg %p170
        $region62: #{tpu_custom_call.1} parent=39 // pred_check_branch
          %743 = sbr.rel (%p741) target = $region64
        $region63: #{tpu_custom_call.1} parent=39 // pred_region
          %s745 = ssub.s32 128, 128
          %746 = vsyncadd [#allocation5], %s745
          %s747 = smul.addr %s27, 128
          %s748 = scalar_lea.hbm %s5, %s747
          %s750 = sshll.u32 [#allocation9], 4
          %s751 = int_to_ptr.vmem [resolvable:$true] %s750
          %753 = dma.vmem_to_hbm [thread:$0]  %s751, 128, %s748, [#allocation5]
        $region64: #{tpu_custom_call.1} parent=39 // pred_fallthru
          _
        // Predicated region
        $region65: #{tpu_custom_call.1} parent=39 // pred_check
          %p754 = pneg %p170
        $region66: #{tpu_custom_call.1} parent=39 // pred_check_branch
          %756 = sbr.rel (%p754) target = $region68
        $region67: #{tpu_custom_call.1} parent=39 // pred_region
          %757 = dma.done [#allocation5], 128
        $region68: #{tpu_custom_call.1} parent=39 // pred_fallthru
          _
      $region40: #{tpu_custom_call.1} parent=5 // pred_fallthru
        _
      %p758 = scmp.le.s32.totalorder 2, %s18
      // Predicated region
      $region69: #{tpu_custom_call.1} parent=5 // pred_check
        %p759 = pneg %p758
      $region70: #{tpu_custom_call.1} parent=5 // pred_check_branch
        %761 = sbr.rel (%p759) target = $region72
      $region71: #{tpu_custom_call.1} parent=5 // pred_region
        %s762 = ssub.s32 %s18, 2
      $region72: #{tpu_custom_call.1} parent=5 // pred_fallthru
        _
    $region6: #{tpu_custom_call.1} parent=1 // loop_footer
      %s22 = sadd.s32 1, %s18
    $region7: #{tpu_custom_call.1} parent=1 // loop_footer_branch
      %17 = sbr.rel target = $region3
    $region8: #{tpu_custom_call.1} parent=1 // loop_exit
      _
    %763 = vsyncpa [#allocation4], 1
    %s764 = scalar_lea.sflag [#allocation4], 1
    %765 = vsyncpa %s764, 1
    %766 = vsyncpa [#allocation7], 1
    %s767 = scalar_lea.sflag [#allocation7], 1
    %768 = vsyncpa %s767, 1
    %769 = vsyncpa [#allocation5], 1
    %s770 = scalar_lea.sflag [#allocation5], 1
    %771 = vsyncpa %s770, 1

// kernel: tpu_custom_call.1
$region0: #{tpu_custom_call.1}
  #allocation0 [shape = 'u32[]', space=smem, size = 0x4, offset = 0x4, fixed_abs, tag = 'smem constant byte address 0x4 - core index']
  #allocation1 [shape = 'u32[144,128]{1,0:T(1,128)}', space=vmem, size = 0x12000, scoped, tag = 'internal scratch']
  #allocation2 [shape = 'f32[8,128]{1,0:T(8,128)}', space=vmem, size = 0x1000, scoped, tag = 'scratch operand']
  %s0 = inlined_call_operand.hbm [shape: f32[8,1536], index: 0, kind: input, shape index: {}]
  %s1 = inlined_call_operand.hbm [shape: f32[1536,128], index: 1, kind: input, shape index: {}]
  %s2 = inlined_call_operand.vmem [shape: f32[1,128], index: 2, kind: input, shape index: {}]
  %s3 = inlined_call_operand.hbm [shape: f32[128,128], index: 3, kind: input, shape index: {}]
  %s4 = inlined_call_operand.vmem [shape: f32[1,128], index: 4, kind: input, shape index: {}]
  %s5 = inlined_call_operand.hbm [shape: f32[8,128], index: 5, kind: output, shape index: {}]
  %s6 = sld [smem:[#allocation0]]
  $region73: #{tpu_custom_call.1} parent=0
    _
  %s8 = ssub.s32 1, %s6
  %s9 = scalar_select 0, %s8, %s6
  $region1: #{tpu_custom_call.1} parent=0
    #allocation3 [shape = 'u8[49152]{0}', space=vmem, size = 0xc000, scoped, tag = 'input window, operand 0']
    #allocation4 [shape = 's32[2]{0}', space=sflag, size = 0x8, scoped, tag = 'scoped memory for tpu_custom_call.1']
    #allocation5 [shape = 's32[2]{0}', space=sflag, size = 0x8, scoped, tag = 'scoped memory for tpu_custom_call.1']
    #allocation6 [shape = 'u8[786432]{0}', space=vmem, size = 0xc0000, scoped, tag = 'input window, operand 1']
    #allocation7 [shape = 's32[2]{0}', space=sflag, size = 0x8, scoped, tag = 'scoped memory for tpu_custom_call.1']
    #allocation8 [shape = 'u8[65536]{0}', space=vmem, size = 0x10000, scoped, tag = 'input window, operand 3, single buffered']
    #allocation9 [shape = 'u8[4096]{0}', space=vmem, size = 0x1000, scoped, tag = 'output window, operand 0, single buffered']
    %10 = vsyncpa [#allocation4], 0
    %s11 = scalar_lea.sflag [#allocation4], 1
    %12 = vsyncpa %s11, 0
    %13 = vsyncpa [#allocation7], 0
    %s14 = scalar_lea.sflag [#allocation7], 1
    %15 = vsyncpa %s14, 0
    %16 = vsyncpa [#allocation5], 0
    loop: start=0, step=1, limit=4
    $region2: #{tpu_custom_call.1} parent=1 // loop_pre_header
      _
    $region3: #{tpu_custom_call.1} parent=1 // loop_header
      %s18 = sphi 0, %s22
      %p19 = scmp.ge.s32.totalorder %s18, 4
      %s25 = sphi 0, %s37
      %s26 = sphi 0, %s33
      %s27 = sphi 0, %s25
      %s28 = sphi 0, %s26
      %s29 = sphi 0, %s27
      %s30 = sphi 0, %s28
      %s42 = sphi 0, %s44
      %s45 = sphi 0, %s42
      %s46 = sphi 0, %s45
      %s62 = sphi 0, %s46
      %s68 = sphi 0, %s70
      %s71 = sphi 0, %s68
      %s72 = sphi 0, %s71
      %s88 = sphi 0, %s72
      %s92 = sphi 0, %s92
      %s94 = sphi 0, %s92
      %s95 = sphi 0, %s94
      %s109 = sphi 0, %s95
      %s113 = sphi 0, %s113
      %s115 = sphi 0, %s113
      %s116 = sphi 0, %s115
      %s130 = sphi 0, %s116
      %s134 = sphi 0, %s134
      %s136 = sphi 0, %s134
      %s137 = sphi 0, %s136
      %s151 = sphi 0, %s137
      %s157 = sphi 0, %s159
      %s160 = sphi 0, %s157
      %s161 = sphi 0, %s160
      %s177 = sphi 0, %s161
    $region4: #{tpu_custom_call.1} parent=1 // loop_header_branch
      %21 = sbr.rel (%p19) target = $region8
    $region5: #{tpu_custom_call.1} parent=1 // loop_body
      %s23 = ssub.s32 %s18, 1
      %s24 = ssub.s32 %s18, 2
      %s31 = sadd.s32 1, %s26
      %p32 = scmp.ge.s32.totalorder %s31, 2
      %s33 = scalar_select %p32, 0, %s31
      %s34 = sadd.s32 1, %s25
      %s35 = scalar_select %p32, %s34, %s25
      %p36 = scmp.ge.s32.totalorder %s35, 1
      %s37 = scalar_select %p36, 0, %s35
      %s38 = ssub.s32 %s25, %s37
      %s39 = ssub.s32 %s26, %s33
      %s40 = sor.u32 %s38, %s39
      %p41 = scmp.eq.s32.totalorder %s40, 0
      %s43 = sadd.s32 %s42, 1
      %s44 = scalar_select %p41, %s42, %s43
      %p47 = pneg %p41
      %p48 = scmp.eq.s32.totalorder %s18, 1
      %p49 = por %p47, %p48
      %p50 = scmp.ne.s32.totalorder %s42, %s45
      %p51 = scmp.eq.s32.totalorder %s18, 0
      %p52 = por %p50, %p51
      %p53 = scmp.ne.s32.totalorder %s42, %s45
      %p54 = scmp.eq.s32.totalorder %s23, 1
      %p55 = por %p53, %p54
      %p56 = scmp.ne.s32.totalorder %s45, %s46
      %p57 = scmp.eq.s32.totalorder %s23, 0
      %p58 = por %p56, %p57
      %p59 = scmp.ne.s32.totalorder %s45, %s46
      %p60 = scmp.eq.s32.totalorder %s24, 1
      %p61 = por %p59, %p60
      %p63 = scmp.ne.s32.totalorder %s46, %s62
      %p64 = scmp.eq.s32.totalorder %s24, 0
      %p65 = por %p63, %p64
      %s66 = ssub.s32 %s26, %s33
      %p67 = scmp.eq.s32.totalorder %s66, 0
      %s69 = sadd.s32 %s68, 1
      %s70 = scalar_select %p67, %s68, %s69
      %p73 = pneg %p67
      %p74 = scmp.eq.s32.totalorder %s18, 1
      %p75 = por %p73, %p74
      %p76 = scmp.ne.s32.totalorder %s68, %s71
      %p77 = scmp.eq.s32.totalorder %s18, 0
      %p78 = por %p76, %p77
      %p79 = scmp.ne.s32.totalorder %s68, %s71
      %p80 = scmp.eq.s32.totalorder %s23, 1
      %p81 = por %p79, %p80
      %p82 = scmp.ne.s32.totalorder %s71, %s72
      %p83 = scmp.eq.s32.totalorder %s23, 0
      %p84 = por %p82, %p83
      %p85 = scmp.ne.s32.totalorder %s71, %s72
      %p86 = scmp.eq.s32.totalorder %s24, 1
      %p87 = por %p85, %p86
      %p89 = scmp.ne.s32.totalorder %s72, %s88
      %p90 = scmp.eq.s32.totalorder %s24, 0
      %p91 = por %p89, %p90
      %s93 = sadd.s32 %s92, 1
      %p96 = scmp.eq.s32.totalorder %s18, 1
      %p97 = scmp.ne.s32.totalorder %s92, %s94
      %p98 = scmp.eq.s32.totalorder %s18, 0
      %p99 = por %p97, %p98
      %p100 = scmp.ne.s32.totalorder %s92, %s94
      %p101 = scmp.eq.s32.totalorder %s23, 1
      %p102 = por %p100, %p101
      %p103 = scmp.ne.s32.totalorder %s94, %s95
      %p104 = scmp.eq.s32.totalorder %s23, 0
      %p105 = por %p103, %p104
      %p106 = scmp.ne.s32.totalorder %s94, %s95
      %p107 = scmp.eq.s32.totalorder %s24, 1
      %p108 = por %p106, %p107
      %p110 = scmp.ne.s32.totalorder %s95, %s109
      %p111 = scmp.eq.s32.totalorder %s24, 0
      %p112 = por %p110, %p111
      %s114 = sadd.s32 %s113, 1
      %p117 = scmp.eq.s32.totalorder %s18, 1
      %p118 = scmp.ne.s32.totalorder %s113, %s115
      %p119 = scmp.eq.s32.totalorder %s18, 0
      %p120 = por %p118, %p119
      %p121 = scmp.ne.s32.totalorder %s113, %s115
      %p122 = scmp.eq.s32.totalorder %s23, 1
      %p123 = por %p121, %p122
      %p124 = scmp.ne.s32.totalorder %s115, %s116
      %p125 = scmp.eq.s32.totalorder %s23, 0
      %p126 = por %p124, %p125
      %p127 = scmp.ne.s32.totalorder %s115, %s116
      %p128 = scmp.eq.s32.totalorder %s24, 1
      %p129 = por %p127, %p128
      %p131 = scmp.ne.s32.totalorder %s116, %s130
      %p132 = scmp.eq.s32.totalorder %s24, 0
      %p133 = por %p131, %p132
      %s135 = sadd.s32 %s134, 1
      %p138 = scmp.eq.s32.totalorder %s18, 1
      %p139 = scmp.ne.s32.totalorder %s134, %s136
      %p140 = scmp.eq.s32.totalorder %s18, 0
      %p141 = por %p139, %p140
      %p142 = scmp.ne.s32.totalorder %s134, %s136
      %p143 = scmp.eq.s32.totalorder %s23, 1
      %p144 = por %p142, %p143
      %p145 = scmp.ne.s32.totalorder %s136, %s137
      %p146 = scmp.eq.s32.totalorder %s23, 0
      %p147 = por %p145, %p146
      %p148 = scmp.ne.s32.totalorder %s136, %s137
      %p149 = scmp.eq.s32.totalorder %s24, 1
      %p150 = por %p148, %p149
      %p152 = scmp.ne.s32.totalorder %s137, %s151
      %p153 = scmp.eq.s32.totalorder %s24, 0
      %p154 = por %p152, %p153
      %s155 = ssub.s32 %s25, %s37
      %p156 = scmp.eq.s32.totalorder %s155, 0
      %s158 = sadd.s32 %s157, 1
      %s159 = scalar_select %p156, %s157, %s158
      %p162 = pneg %p156
      %p163 = scmp.eq.s32.totalorder %s18, 1
      %p164 = por %p162, %p163
      %p165 = scmp.ne.s32.totalorder %s157, %s160
      %p166 = scmp.eq.s32.totalorder %s18, 0
      %p167 = por %p165, %p166
      %p168 = scmp.ne.s32.totalorder %s157, %s160
      %p169 = scmp.eq.s32.totalorder %s23, 1
      %p170 = por %p168, %p169
      %p171 = scmp.ne.s32.totalorder %s160, %s161
      %p172 = scmp.eq.s32.totalorder %s23, 0
      %p173 = por %p171, %p172
      %p174 = scmp.ne.s32.totalorder %s160, %s161
      %p175 = scmp.eq.s32.totalorder %s24, 1
      %p176 = por %p174, %p175
      %p178 = scmp.ne.s32.totalorder %s161, %s177
      %p179 = scmp.eq.s32.totalorder %s24, 0
      %p180 = por %p178, %p179
      %p181 = scmp.le.s32.totalorder 1, %s18
      %p182 = scmp.lt.s32.totalorder %s18, 3
      %p183 = pnand %p181, %p182
      %p184 = pneg %p183
      // Predicated region
      $region9: #{tpu_custom_call.1} parent=5 // pred_check
        _
      $region10: #{tpu_custom_call.1} parent=5 // pred_check_branch
        %186 = sbr.rel (%p183) target = $region12
      $region11: #{tpu_custom_call.1} parent=5 // pred_region
        %s187 = ssub.s32 %s18, 1
        // Predicated region
        $region13: #{tpu_custom_call.1} parent=11 // pred_check
          %p188 = pneg %p105
        $region14: #{tpu_custom_call.1} parent=11 // pred_check_branch
          %190 = sbr.rel (%p188) target = $region16
        $region15: #{tpu_custom_call.1} parent=11 // pred_region
          _
        $region16: #{tpu_custom_call.1} parent=11 // pred_fallthru
          _
        // Predicated region
        $region17: #{tpu_custom_call.1} parent=11 // pred_check
          %p191 = pneg %p126
        $region18: #{tpu_custom_call.1} parent=11 // pred_check_branch
          %193 = sbr.rel (%p191) target = $region20
        $region19: #{tpu_custom_call.1} parent=11 // pred_region
          %s195 = ssub.s32 2048, 2048
          %196 = vsyncadd [#allocation7], %s195
          %s197 = sshll.u32 [#allocation8], 4
          %s198 = int_to_ptr.vmem [resolvable:$true] %s197
          %203 = dma.hbm_to_vmem [thread:$0]  %s3, 2048, %s198, [#allocation7], 128, 128, 8
        $region20: #{tpu_custom_call.1} parent=11 // pred_fallthru
          _
        // Predicated region
        $region21: #{tpu_custom_call.1} parent=11 // pred_check
          %p204 = pneg %p147
        $region22: #{tpu_custom_call.1} parent=11 // pred_check_branch
          %206 = sbr.rel (%p204) target = $region24
        $region23: #{tpu_custom_call.1} parent=11 // pred_region
          _
        $region24: #{tpu_custom_call.1} parent=11 // pred_fallthru
          _
      $region12: #{tpu_custom_call.1} parent=5 // pred_fallthru
        _
      %p207 = scmp.lt.s32.totalorder %s18, 2
      // Predicated region
      $region25: #{tpu_custom_call.1} parent=5 // pred_check
        %p208 = pneg %p207
      $region26: #{tpu_custom_call.1} parent=5 // pred_check_branch
        %210 = sbr.rel (%p208) target = $region28
      $region27: #{tpu_custom_call.1} parent=5 // pred_region
        // Predicated region
        $region29: #{tpu_custom_call.1} parent=27 // pred_check
          %p211 = pneg %p52
        $region30: #{tpu_custom_call.1} parent=27 // pred_check_branch
          %213 = sbr.rel (%p211) target = $region32
        $region31: #{tpu_custom_call.1} parent=27 // pred_region
          %s214 = sand.u32 %s42, 1
          %s215 = scalar_lea.sflag [#allocation4], %s214
          %s216 = sand.u32 %s42, 1
          %s217 = smul.addr %s216, 48
          %s218 = scalar_lea.vmem [#allocation3], %s217
          %s219 = smul.u32 6, %s26
          %s221 = ssub.s32 768, 768
          %222 = vsyncadd %s215, %s221
          %s223 = smul.addr %s25, 12
          %s224 = sadd.s32 %s219, %s223
          %s225 = smul.addr %s224, 128
          %s226 = scalar_lea.hbm %s0, %s225
          %s228 = sshll.u32 %s218, 4
          %s229 = int_to_ptr.vmem [resolvable:$true] %s228
          %231 = dma.hbm_to_vmem [thread:$0]  %s226, 768, %s229, %s215
        $region32: #{tpu_custom_call.1} parent=27 // pred_fallthru
          _
        // Predicated region
        $region33: #{tpu_custom_call.1} parent=27 // pred_check
          %p232 = pneg %p78
        $region34: #{tpu_custom_call.1} parent=27 // pred_check_branch
          %234 = sbr.rel (%p232) target = $region36
        $region35: #{tpu_custom_call.1} parent=27 // pred_region
          %s235 = sand.u32 %s18, 1
          %s236 = scalar_lea.sflag [#allocation7], %s235
          %s237 = sand.u32 %s68, 1
          %s238 = smul.addr %s237, 768
          %s239 = scalar_lea.vmem [#allocation6], %s238
          %s240 = smul.u32 96, %s26
          %s242 = ssub.s32 12288, 12288
          %243 = vsyncadd %s236, %s242
          %s244 = smul.addr %s240, 128
          %s245 = scalar_lea.hbm %s1, %s244
          %s246 = sshll.u32 %s239, 4
          %s247 = int_to_ptr.vmem [resolvable:$true] %s246
          %252 = dma.hbm_to_vmem [thread:$0]  %s245, 12288, %s247, %s236, 128, 128, 8
        $region36: #{tpu_custom_call.1} parent=27 // pred_fallthru
          _
      $region28: #{tpu_custom_call.1} parent=5 // pred_fallthru
        _
      %p253 = scmp.le.s32.totalorder 1, %s18
      %p254 = scmp.lt.s32.totalorder %s18, 3
      %p255 = pnand %p253, %p254
      %p256 = pneg %p255
      // Predicated region
      $region37: #{tpu_custom_call.1} parent=5 // pred_check
        _
      $region38: #{tpu_custom_call.1} parent=5 // pred_check_branch
        %258 = sbr.rel (%p255) target = $region40
      $region39: #{tpu_custom_call.1} parent=5 // pred_region
        %s259 = ssub.s32 %s18, 1
        %s260 = sand.u32 %s45, 1
        %s261 = scalar_lea.sflag [#allocation4], %s260
        %s262 = sand.u32 %s45, 1
        %s263 = smul.addr %s262, 48
        %s264 = scalar_lea.vmem [#allocation3], %s263
        // Predicated region
        $region41: #{tpu_custom_call.1} parent=39 // pred_check
          %p265 = pneg %p58
        $region42: #{tpu_custom_call.1} parent=39 // pred_check_branch
          %267 = sbr.rel (%p265) target = $region44
        $region43: #{tpu_custom_call.1} parent=39 // pred_region
          %268 = dma.done %s261, 768
        $region44: #{tpu_custom_call.1} parent=39 // pred_fallthru
          _
        %s269 = sand.u32 %s23, 1
        %s270 = scalar_lea.sflag [#allocation7], %s269
        %s271 = sand.u32 %s71, 1
        %s272 = smul.addr %s271, 768
        %s273 = scalar_lea.vmem [#allocation6], %s272
        // Predicated region
        $region45: #{tpu_custom_call.1} parent=39 // pred_check
          %p274 = pneg %p84
        $region46: #{tpu_custom_call.1} parent=39 // pred_check_branch
          %276 = sbr.rel (%p274) target = $region48
        $region47: #{tpu_custom_call.1} parent=39 // pred_region
          %277 = dma.done %s270, 12288
        $region48: #{tpu_custom_call.1} parent=39 // pred_fallthru
          _
        // Predicated region
        $region49: #{tpu_custom_call.1} parent=39 // pred_check
          %p278 = pneg %p126
        $region50: #{tpu_custom_call.1} parent=39 // pred_check_branch
          %280 = sbr.rel (%p278) target = $region52
        $region51: #{tpu_custom_call.1} parent=39 // pred_region
          %281 = dma.done [#allocation7], 2048
        $region52: #{tpu_custom_call.1} parent=39 // pred_fallthru
          _
        %s282 = sand.u32 %s45, 1
        %s283 = scalar_lea.sflag [#allocation4], %s282
        %s284 = sand.u32 %s45, 1
        %s285 = smul.addr %s284, 48
        %s286 = scalar_lea.vmem [#allocation3], %s285
        %p287 = pneg %p58
        %p288 = pneg %p55
        %s289 = sand.u32 %s23, 1
        %s290 = scalar_lea.sflag [#allocation7], %s289
        %s291 = sand.u32 %s71, 1
        %s292 = smul.addr %s291, 768
        %s293 = scalar_lea.vmem [#allocation6], %s292
        %p294 = pneg %p84
        %p295 = pneg %p81
        %p296 = pneg %p105
        %p297 = pneg %p102
        %p298 = pneg %p126
        %p299 = pneg %p123
        %p300 = pneg %p147
        %p301 = pneg %p144
        %p302 = pneg %p173
        %p303 = pneg %p170
        %s304 = smul.u32 6, %s28
        %s305 = smul.u32 96, %s28
        %p306 = scmp.eq.s32.totalorder %s28, 0
        // Predicated region
        $region53: #{tpu_custom_call.1} parent=39 // pred_check
          %p307 = pneg %p306
        $region54: #{tpu_custom_call.1} parent=39 // pred_check_branch
          %309 = sbr.rel (%p307) target = $region56
        $region55: #{tpu_custom_call.1} parent=39 // pred_region
          %310 = vst [vmem:[#allocation2] sm:$0xff] 0.0
        $region56: #{tpu_custom_call.1} parent=39 // pred_fallthru
          _
        %v311 = vld [vmem:[%s264] sm:$0xff]
        %v312 = vld [vmem:[%s264 + $0x8] sm:$0xff]
        %v313 = vld [vmem:[%s264 + $0x10] sm:$0xff]
        %v314 = vld [vmem:[%s264 + $0x18] sm:$0xff]
        %v315 = vld [vmem:[%s264 + $0x20] sm:$0xff]
        %v316 = vld [vmem:[%s264 + $0x28] sm:$0xff]
        %v317 = vld [vmem:[#allocation2] sm:$0xff]
        %v318 = vld [vmem:[%s273] sm:$0xff]
        %v319 = vld [vmem:[%s273 + $0x8] sm:$0xff]
        %v320 = vld [vmem:[%s273 + $0x10] sm:$0xff]
        %v321 = vld [vmem:[%s273 + $0x18] sm:$0xff]
        %v322 = vld [vmem:[%s273 + $0x20] sm:$0xff]
        %v323 = vld [vmem:[%s273 + $0x28] sm:$0xff]
        %v324 = vld [vmem:[%s273 + $0x30] sm:$0xff]
        %v325 = vld [vmem:[%s273 + $0x38] sm:$0xff]
        %v326 = vld [vmem:[%s273 + $0x40] sm:$0xff]
        %v327 = vld [vmem:[%s273 + $0x48] sm:$0xff]
        %v328 = vld [vmem:[%s273 + $0x50] sm:$0xff]
        %v329 = vld [vmem:[%s273 + $0x58] sm:$0xff]
        %v330 = vld [vmem:[%s273 + $0x60] sm:$0xff]
        %v331 = vld [vmem:[%s273 + $0x68] sm:$0xff]
        %v332 = vld [vmem:[%s273 + $0x70] sm:$0xff]
        %v333 = vld [vmem:[%s273 + $0x78] sm:$0xff]
        %v334 = vld [vmem:[%s273 + $0x80] sm:$0xff]
        %v335 = vld [vmem:[%s273 + $0x88] sm:$0xff]
        %v336 = vld [vmem:[%s273 + $0x90] sm:$0xff]
        %v337 = vld [vmem:[%s273 + $0x98] sm:$0xff]
        %v338 = vld [vmem:[%s273 + $0xa0] sm:$0xff]
        %v339 = vld [vmem:[%s273 + $0xa8] sm:$0xff]
        %v340 = vld [vmem:[%s273 + $0xb0] sm:$0xff]
        %v341 = vld [vmem:[%s273 + $0xb8] sm:$0xff]
        %v342 = vld [vmem:[%s273 + $0xc0] sm:$0xff]
        %v343 = vld [vmem:[%s273 + $0xc8] sm:$0xff]
        %v344 = vld [vmem:[%s273 + $0xd0] sm:$0xff]
        %v345 = vld [vmem:[%s273 + $0xd8] sm:$0xff]
        %v346 = vld [vmem:[%s273 + $0xe0] sm:$0xff]
        %v347 = vld [vmem:[%s273 + $0xe8] sm:$0xff]
        %v348 = vld [vmem:[%s273 + $0xf0] sm:$0xff]
        %v349 = vld [vmem:[%s273 + $0xf8] sm:$0xff]
        %v350 = vld [vmem:[%s273 + $0x100] sm:$0xff]
        %v351 = vld [vmem:[%s273 + $0x108] sm:$0xff]
        %v352 = vld [vmem:[%s273 + $0x110] sm:$0xff]
        %v353 = vld [vmem:[%s273 + $0x118] sm:$0xff]
        %v354 = vld [vmem:[%s273 + $0x120] sm:$0xff]
        %v355 = vld [vmem:[%s273 + $0x128] sm:$0xff]
        %v356 = vld [vmem:[%s273 + $0x130] sm:$0xff]
        %v357 = vld [vmem:[%s273 + $0x138] sm:$0xff]
        %v358 = vld [vmem:[%s273 + $0x140] sm:$0xff]
        %v359 = vld [vmem:[%s273 + $0x148] sm:$0xff]
        %v360 = vld [vmem:[%s273 + $0x150] sm:$0xff]
        %v361 = vld [vmem:[%s273 + $0x158] sm:$0xff]
        %v362 = vld [vmem:[%s273 + $0x160] sm:$0xff]
        %v363 = vld [vmem:[%s273 + $0x168] sm:$0xff]
        %v364 = vld [vmem:[%s273 + $0x170] sm:$0xff]
        %v365 = vld [vmem:[%s273 + $0x178] sm:$0xff]
        %v366 = vld [vmem:[%s273 + $0x180] sm:$0xff]
        %v367 = vld [vmem:[%s273 + $0x188] sm:$0xff]
        %v368 = vld [vmem:[%s273 + $0x190] sm:$0xff]
        %v369 = vld [vmem:[%s273 + $0x198] sm:$0xff]
        %v370 = vld [vmem:[%s273 + $0x1a0] sm:$0xff]
        %v371 = vld [vmem:[%s273 + $0x1a8] sm:$0xff]
        %v372 = vld [vmem:[%s273 + $0x1b0] sm:$0xff]
        %v373 = vld [vmem:[%s273 + $0x1b8] sm:$0xff]
        %v374 = vld [vmem:[%s273 + $0x1c0] sm:$0xff]
        %v375 = vld [vmem:[%s273 + $0x1c8] sm:$0xff]
        %v376 = vld [vmem:[%s273 + $0x1d0] sm:$0xff]
        %v377 = vld [vmem:[%s273 + $0x1d8] sm:$0xff]
        %v378 = vld [vmem:[%s273 + $0x1e0] sm:$0xff]
        %v379 = vld [vmem:[%s273 + $0x1e8] sm:$0xff]
        %v380 = vld [vmem:[%s273 + $0x1f0] sm:$0xff]
        %v381 = vld [vmem:[%s273 + $0x1f8] sm:$0xff]
        %v382 = vld [vmem:[%s273 + $0x200] sm:$0xff]
        %v383 = vld [vmem:[%s273 + $0x208] sm:$0xff]
        %v384 = vld [vmem:[%s273 + $0x210] sm:$0xff]
        %v385 = vld [vmem:[%s273 + $0x218] sm:$0xff]
        %v386 = vld [vmem:[%s273 + $0x220] sm:$0xff]
        %v387 = vld [vmem:[%s273 + $0x228] sm:$0xff]
        %v388 = vld [vmem:[%s273 + $0x230] sm:$0xff]
        %v389 = vld [vmem:[%s273 + $0x238] sm:$0xff]
        %v390 = vld [vmem:[%s273 + $0x240] sm:$0xff]
        %v391 = vld [vmem:[%s273 + $0x248] sm:$0xff]
        %v392 = vld [vmem:[%s273 + $0x250] sm:$0xff]
        %v393 = vld [vmem:[%s273 + $0x258] sm:$0xff]
        %v394 = vld [vmem:[%s273 + $0x260] sm:$0xff]
        %v395 = vld [vmem:[%s273 + $0x268] sm:$0xff]
        %v396 = vld [vmem:[%s273 + $0x270] sm:$0xff]
        %v397 = vld [vmem:[%s273 + $0x278] sm:$0xff]
        %v398 = vld [vmem:[%s273 + $0x280] sm:$0xff]
        %v399 = vld [vmem:[%s273 + $0x288] sm:$0xff]
        %v400 = vld [vmem:[%s273 + $0x290] sm:$0xff]
        %v401 = vld [vmem:[%s273 + $0x298] sm:$0xff]
        %v402 = vld [vmem:[%s273 + $0x2a0] sm:$0xff]
        %v403 = vld [vmem:[%s273 + $0x2a8] sm:$0xff]
        %v404 = vld [vmem:[%s273 + $0x2b0] sm:$0xff]
        %v405 = vld [vmem:[%s273 + $0x2b8] sm:$0xff]
        %v406 = vld [vmem:[%s273 + $0x2c0] sm:$0xff]
        %v407 = vld [vmem:[%s273 + $0x2c8] sm:$0xff]
        %v408 = vld [vmem:[%s273 + $0x2d0] sm:$0xff]
        %v409 = vld [vmem:[%s273 + $0x2d8] sm:$0xff]
        %v410 = vld [vmem:[%s273 + $0x2e0] sm:$0xff]
        %v411 = vld [vmem:[%s273 + $0x2e8] sm:$0xff]
        %v412 = vld [vmem:[%s273 + $0x2f0] sm:$0xff]
        %v413 = vld [vmem:[%s273 + $0x2f8] sm:$0xff]
        %414 = vmatprep.subr.mxu0 0.0
        %415 = vmatpush1.msra.mxu0 %v333
        %416 = vmatprep.subr.mxu0 0.0
        %417 = vmatpush1.msra.mxu0 %v332
        %418 = vmatprep.subr.mxu0 0.0
        %419 = vmatpush1.msra.mxu0 %v331
        %420 = vmatprep.subr.mxu0 0.0
        %421 = vmatpush1.msra.mxu0 %v330
        %422 = vmatprep.subr.mxu0 0.0
        %423 = vmatpush1.msra.mxu0 %v329
        %424 = vmatprep.subr.mxu0 0.0
        %425 = vmatpush1.msra.mxu0 %v328
        %426 = vmatprep.subr.mxu0 0.0
        %427 = vmatpush1.msra.mxu0 %v327
        %428 = vmatprep.subr.mxu0 0.0
        %429 = vmatpush1.msra.mxu0 %v326
        %430 = vmatprep.subr.mxu0 0.0
        %431 = vmatpush1.msra.mxu0 %v325
        %432 = vmatprep.subr.mxu0 0.0
        %433 = vmatpush1.msra.mxu0 %v324
        %434 = vmatprep.subr.mxu0 0.0
        %435 = vmatpush1.msra.mxu0 %v323
        %436 = vmatprep.subr.mxu0 0.0
        %437 = vmatpush1.msra.mxu0 %v322
        %438 = vmatprep.subr.mxu0 0.0
        %439 = vmatpush1.msra.mxu0 %v321
        %440 = vmatprep.subr.mxu0 0.0
        %441 = vmatpush1.msra.mxu0 %v320
        %442 = vmatprep.subr.mxu0 0.0
        %443 = vmatpush1.msra.mxu0 %v319
        %444 = vmatprep.subr.mxu0 0.0
        %445 = vmatpush1.msra.mxu0 %v318
        %446 = vmatprep.subr.mxu0 0.0
        %447 = vmatpush2.msra.mxu0 %v349
        %448 = vmatprep.subr.mxu0 0.0
        %449 = vmatpush2.msra.mxu0 %v348
        %450 = vmatprep.subr.mxu0 0.0
        %451 = vmatpush2.msra.mxu0 %v347
        %452 = vmatprep.subr.mxu0 0.0
        %453 = vmatpush2.msra.mxu0 %v346
        %454 = vmatprep.subr.mxu0 0.0
        %455 = vmatpush2.msra.mxu0 %v345
        %456 = vmatprep.subr.mxu0 0.0
        %457 = vmatpush2.msra.mxu0 %v344
        %458 = vmatprep.subr.mxu0 0.0
        %459 = vmatpush2.msra.mxu0 %v343
        %460 = vmatprep.subr.mxu0 0.0
        %461 = vmatpush2.msra.mxu0 %v342
        %462 = vmatprep.subr.mxu0 0.0
        %463 = vmatpush2.msra.mxu0 %v341
        %464 = vmatprep.subr.mxu0 0.0
        %465 = vmatpush2.msra.mxu0 %v340
        %466 = vmatprep.subr.mxu0 0.0
        %467 = vmatpush2.msra.mxu0 %v339
        %468 = vmatprep.subr.mxu0 0.0
        %469 = vmatpush2.msra.mxu0 %v338
        %470 = vmatprep.subr.mxu0 0.0
        %471 = vmatpush2.msra.mxu0 %v337
        %472 = vmatprep.subr.mxu0 0.0
        %473 = vmatpush2.msra.mxu0 %v336
        %474 = vmatprep.subr.mxu0 0.0
        %475 = vmatpush2.msra.mxu0 %v335
        %476 = vmatprep.subr.mxu0 0.0
        %477 = vmatpush2.msra.mxu0 %v334
        %478 = vmatprep.mubr.f32.mxu0 %v312
        %479 = vmatmul.mubr.f32.gmra.mxu0 %v311
        %v480 = vpop.f32.mrf.mxu0
        %v481 = vadd.f32 0.0, %v480
        %v482 = vpop.f32.mrf.mxu0
        %483 = vdwg.mxu0
        %484 = vmatprep.subr.mxu0 0.0
        %485 = vmatpush1.msra.mxu0 %v365
        %486 = vmatprep.subr.mxu0 0.0
        %487 = vmatpush1.msra.mxu0 %v364
        %488 = vmatprep.subr.mxu0 0.0
        %489 = vmatpush1.msra.mxu0 %v363
        %490 = vmatprep.subr.mxu0 0.0
        %491 = vmatpush1.msra.mxu0 %v362
        %492 = vmatprep.subr.mxu0 0.0
        %493 = vmatpush1.msra.mxu0 %v361
        %494 = vmatprep.subr.mxu0 0.0
        %495 = vmatpush1.msra.mxu0 %v360
        %496 = vmatprep.subr.mxu0 0.0
        %497 = vmatpush1.msra.mxu0 %v359
        %498 = vmatprep.subr.mxu0 0.0
        %499 = vmatpush1.msra.mxu0 %v358
        %500 = vmatprep.subr.mxu0 0.0
        %501 = vmatpush1.msra.mxu0 %v357
        %502 = vmatprep.subr.mxu0 0.0
        %503 = vmatpush1.msra.mxu0 %v356
        %504 = vmatprep.subr.mxu0 0.0
        %505 = vmatpush1.msra.mxu0 %v355
        %506 = vmatprep.subr.mxu0 0.0
        %507 = vmatpush1.msra.mxu0 %v354
        %508 = vmatprep.subr.mxu0 0.0
        %509 = vmatpush1.msra.mxu0 %v353
        %510 = vmatprep.subr.mxu0 0.0
        %511 = vmatpush1.msra.mxu0 %v352
        %512 = vmatprep.subr.mxu0 0.0
        %513 = vmatpush1.msra.mxu0 %v351
        %514 = vmatprep.subr.mxu0 0.0
        %515 = vmatpush1.msra.mxu0 %v350
        %516 = vmatprep.subr.mxu0 0.0
        %517 = vmatpush2.msra.mxu0 %v381
        %518 = vmatprep.subr.mxu0 0.0
        %519 = vmatpush2.msra.mxu0 %v380
        %520 = vmatprep.subr.mxu0 0.0
        %521 = vmatpush2.msra.mxu0 %v379
        %522 = vmatprep.subr.mxu0 0.0
        %523 = vmatpush2.msra.mxu0 %v378
        %524 = vmatprep.subr.mxu0 0.0
        %525 = vmatpush2.msra.mxu0 %v377
        %526 = vmatprep.subr.mxu0 0.0
        %527 = vmatpush2.msra.mxu0 %v376
        %528 = vmatprep.subr.mxu0 0.0
        %529 = vmatpush2.msra.mxu0 %v375
        %530 = vmatprep.subr.mxu0 0.0
        %531 = vmatpush2.msra.mxu0 %v374
        %532 = vmatprep.subr.mxu0 0.0
        %533 = vmatpush2.msra.mxu0 %v373
        %534 = vmatprep.subr.mxu0 0.0
        %535 = vmatpush2.msra.mxu0 %v372
        %536 = vmatprep.subr.mxu0 0.0
        %537 = vmatpush2.msra.mxu0 %v371
        %538 = vmatprep.subr.mxu0 0.0
        %539 = vmatpush2.msra.mxu0 %v370
        %540 = vmatprep.subr.mxu0 0.0
        %541 = vmatpush2.msra.mxu0 %v369
        %542 = vmatprep.subr.mxu0 0.0
        %543 = vmatpush2.msra.mxu0 %v368
        %544 = vmatprep.subr.mxu0 0.0
        %545 = vmatpush2.msra.mxu0 %v367
        %546 = vmatprep.subr.mxu0 0.0
        %547 = vmatpush2.msra.mxu0 %v366
        %548 = vmatprep.mubr.f32.mxu0 %v314
        %549 = vmatmul.mubr.f32.gmra.mxu0 %v313
        %v550 = vpop.f32.mrf.mxu0
        %v551 = vadd.f32 %v481, %v550
        %v552 = vpop.f32.mrf.mxu0
        %553 = vdwg.mxu0
        %554 = vmatprep.subr.mxu0 0.0
        %555 = vmatpush1.msra.mxu0 %v397
        %556 = vmatprep.subr.mxu0 0.0
        %557 = vmatpush1.msra.mxu0 %v396
        %558 = vmatprep.subr.mxu0 0.0
        %559 = vmatpush1.msra.mxu0 %v395
        %560 = vmatprep.subr.mxu0 0.0
        %561 = vmatpush1.msra.mxu0 %v394
        %562 = vmatprep.subr.mxu0 0.0
        %563 = vmatpush1.msra.mxu0 %v393
        %564 = vmatprep.subr.mxu0 0.0
        %565 = vmatpush1.msra.mxu0 %v392
        %566 = vmatprep.subr.mxu0 0.0
        %567 = vmatpush1.msra.mxu0 %v391
        %568 = vmatprep.subr.mxu0 0.0
        %569 = vmatpush1.msra.mxu0 %v390
        %570 = vmatprep.subr.mxu0 0.0
        %571 = vmatpush1.msra.mxu0 %v389
        %572 = vmatprep.subr.mxu0 0.0
        %573 = vmatpush1.msra.mxu0 %v388
        %574 = vmatprep.subr.mxu0 0.0
        %575 = vmatpush1.msra.mxu0 %v387
        %576 = vmatprep.subr.mxu0 0.0
        %577 = vmatpush1.msra.mxu0 %v386
        %578 = vmatprep.subr.mxu0 0.0
        %579 = vmatpush1.msra.mxu0 %v385
        %580 = vmatprep.subr.mxu0 0.0
        %581 = vmatpush1.msra.mxu0 %v384
        %582 = vmatprep.subr.mxu0 0.0
        %583 = vmatpush1.msra.mxu0 %v383
        %584 = vmatprep.subr.mxu0 0.0
        %585 = vmatpush1.msra.mxu0 %v382
        %586 = vmatprep.subr.mxu0 0.0
        %587 = vmatpush2.msra.mxu0 %v413
        %588 = vmatprep.subr.mxu0 0.0
        %589 = vmatpush2.msra.mxu0 %v412
        %590 = vmatprep.subr.mxu0 0.0
        %591 = vmatpush2.msra.mxu0 %v411
        %592 = vmatprep.subr.mxu0 0.0
        %593 = vmatpush2.msra.mxu0 %v410
        %594 = vmatprep.subr.mxu0 0.0
        %595 = vmatpush2.msra.mxu0 %v409
        %596 = vmatprep.subr.mxu0 0.0
        %597 = vmatpush2.msra.mxu0 %v408
        %598 = vmatprep.subr.mxu0 0.0
        %599 = vmatpush2.msra.mxu0 %v407
        %600 = vmatprep.subr.mxu0 0.0
        %601 = vmatpush2.msra.mxu0 %v406
        %602 = vmatprep.subr.mxu0 0.0
        %603 = vmatpush2.msra.mxu0 %v405
        %604 = vmatprep.subr.mxu0 0.0
        %605 = vmatpush2.msra.mxu0 %v404
        %606 = vmatprep.subr.mxu0 0.0
        %607 = vmatpush2.msra.mxu0 %v403
        %608 = vmatprep.subr.mxu0 0.0
        %609 = vmatpush2.msra.mxu0 %v402
        %610 = vmatprep.subr.mxu0 0.0
        %611 = vmatpush2.msra.mxu0 %v401
        %612 = vmatprep.subr.mxu0 0.0
        %613 = vmatpush2.msra.mxu0 %v400
        %614 = vmatprep.subr.mxu0 0.0
        %615 = vmatpush2.msra.mxu0 %v399
        %616 = vmatprep.subr.mxu0 0.0
        %617 = vmatpush2.msra.mxu0 %v398
        %618 = vmatprep.mubr.f32.mxu0 %v316
        %619 = vmatmul.mubr.f32.gmra.mxu0 %v315
        %v620 = vpop.f32.mrf.mxu0
        %v621 = vadd.f32 %v551, %v620
        %v622 = vpop.f32.mrf.mxu0
        %623 = vdwg.mxu0
        %v624 = vadd.f32 %v317, %v621
        %625 = vst [vmem:[#allocation2] sm:$0xff] %v624
        %p626 = scmp.eq.s32.totalorder %s28, 1
        // Predicated region
        $region57: #{tpu_custom_call.1} parent=39 // pred_check
          %p627 = pneg %p626
        $region58: #{tpu_custom_call.1} parent=39 // pred_check_branch
          %629 = sbr.rel (%p627) target = $region60
        $region59: #{tpu_custom_call.1} parent=39 // pred_region
          %v630 = vld [vmem:[#allocation2] sm:$0xff]
          %v631 = vld [vmem:[%s2] sm:$0x1]
          %v633 = vlaneseq
          %v634 = vshrl.u32 %v633, 7
          %v635 = vsub.s32 0, %v634
          %v636 = vrot.slane %v631, %v635
          %v638 = vadd.f32 %v630, %v636
          %v639 = vmax.f32 %v638, 0.0
          %v640 = vld [vmem:[#allocation8] sm:$0xff]
          %v641 = vld [vmem:[#allocation8 + $0x8] sm:$0xff]
          %v642 = vld [vmem:[#allocation8 + $0x10] sm:$0xff]
          %v643 = vld [vmem:[#allocation8 + $0x18] sm:$0xff]
          %v644 = vld [vmem:[#allocation8 + $0x20] sm:$0xff]
          %v645 = vld [vmem:[#allocation8 + $0x28] sm:$0xff]
          %v646 = vld [vmem:[#allocation8 + $0x30] sm:$0xff]
          %v647 = vld [vmem:[#allocation8 + $0x38] sm:$0xff]
          %v648 = vld [vmem:[#allocation8 + $0x40] sm:$0xff]
          %v649 = vld [vmem:[#allocation8 + $0x48] sm:$0xff]
          %v650 = vld [vmem:[#allocation8 + $0x50] sm:$0xff]
          %v651 = vld [vmem:[#allocation8 + $0x58] sm:$0xff]
          %v652 = vld [vmem:[#allocation8 + $0x60] sm:$0xff]
          %v653 = vld [vmem:[#allocation8 + $0x68] sm:$0xff]
          %v654 = vld [vmem:[#allocation8 + $0x70] sm:$0xff]
          %v655 = vld [vmem:[#allocation8 + $0x78] sm:$0xff]
          %v656 = vld [vmem:[%s4] sm:$0x1]
          %v658 = vlaneseq
          %v659 = vshrl.u32 %v658, 7
          %v660 = vsub.s32 0, %v659
          %v661 = vrot.slane %v656, %v660
          %663 = vmatprep.subr.mxu0 0.0
          %664 = vmatpush1.msra.mxu0 %v655
          %665 = vmatprep.subr.mxu0 0.0
          %666 = vmatpush1.msra.mxu0 %v654
          %667 = vmatprep.subr.mxu0 0.0
          %668 = vmatpush1.msra.mxu0 %v653
          %669 = vmatprep.subr.mxu0 0.0
          %670 = vmatpush1.msra.mxu0 %v652
          %671 = vmatprep.subr.mxu0 0.0
          %672 = vmatpush1.msra.mxu0 %v651
          %673 = vmatprep.subr.mxu0 0.0
          %674 = vmatpush1.msra.mxu0 %v650
          %675 = vmatprep.subr.mxu0 0.0
          %676 = vmatpush1.msra.mxu0 %v649
          %677 = vmatprep.subr.mxu0 0.0
          %678 = vmatpush1.msra.mxu0 %v648
          %679 = vmatprep.subr.mxu0 0.0
          %680 = vmatpush1.msra.mxu0 %v647
          %681 = vmatprep.subr.mxu0 0.0
          %682 = vmatpush1.msra.mxu0 %v646
          %683 = vmatprep.subr.mxu0 0.0
          %684 = vmatpush1.msra.mxu0 %v645
          %685 = vmatprep.subr.mxu0 0.0
          %686 = vmatpush1.msra.mxu0 %v644
          %687 = vmatprep.subr.mxu0 0.0
          %688 = vmatpush1.msra.mxu0 %v643
          %689 = vmatprep.subr.mxu0 0.0
          %690 = vmatpush1.msra.mxu0 %v642
          %691 = vmatprep.subr.mxu0 0.0
          %692 = vmatpush1.msra.mxu0 %v641
          %693 = vmatprep.subr.mxu0 0.0
          %694 = vmatpush1.msra.mxu0 %v640
          %695 = vmatprep.subr.mxu0 0.0
          %696 = vmatpush2.msra.mxu0 0.0
          %697 = vmatprep.subr.mxu0 0.0
          %698 = vmatpush2.msra.mxu0 0.0
          %699 = vmatprep.subr.mxu0 0.0
          %700 = vmatpush2.msra.mxu0 0.0
          %701 = vmatprep.subr.mxu0 0.0
          %702 = vmatpush2.msra.mxu0 0.0
          %703 = vmatprep.subr.mxu0 0.0
          %704 = vmatpush2.msra.mxu0 0.0
          %705 = vmatprep.subr.mxu0 0.0
          %706 = vmatpush2.msra.mxu0 0.0
          %707 = vmatprep.subr.mxu0 0.0
          %708 = vmatpush2.msra.mxu0 0.0
          %709 = vmatprep.subr.mxu0 0.0
          %710 = vmatpush2.msra.mxu0 0.0
          %711 = vmatprep.subr.mxu0 0.0
          %712 = vmatpush2.msra.mxu0 0.0
          %713 = vmatprep.subr.mxu0 0.0
          %714 = vmatpush2.msra.mxu0 0.0
          %715 = vmatprep.subr.mxu0 0.0
          %716 = vmatpush2.msra.mxu0 0.0
          %717 = vmatprep.subr.mxu0 0.0
          %718 = vmatpush2.msra.mxu0 0.0
          %719 = vmatprep.subr.mxu0 0.0
          %720 = vmatpush2.msra.mxu0 0.0
          %721 = vmatprep.subr.mxu0 0.0
          %722 = vmatpush2.msra.mxu0 0.0
          %723 = vmatprep.subr.mxu0 0.0
          %724 = vmatpush2.msra.mxu0 0.0
          %725 = vmatprep.subr.mxu0 0.0
          %726 = vmatpush2.msra.mxu0 0.0
          %727 = vmatprep.mubr.f32.mxu0 0.0
          %728 = vmatmul.mubr.f32.gmra.mxu0 %v639
          %v729 = vpop.f32.mrf.mxu0
          %v730 = vadd.f32 %v661, %v729
          %v731 = vpop.f32.mrf.mxu0
          %732 = vdwg.mxu0
          %v733 = vmax.f32 %v730, 0.0
          %v734 = vmul.f32 %v733, %v733
          %735 = vadd.xlane.f32.xlu0 %v734
          %v736 = vpop.xlane.xlu0 %735
          %v737 = vmax.f32 %v736, 1e-24
          %v738 = vrsqrt.pop %v737
          %v739 = vmul.f32 %v733, %v738
          %740 = vst [vmem:[#allocation9] sm:$0xff] %v739
        $region60: #{tpu_custom_call.1} parent=39 // pred_fallthru
          _
        // Predicated region
        $region61: #{tpu_custom_call.1} parent=39 // pred_check
          %p741 = pneg %p170
        $region62: #{tpu_custom_call.1} parent=39 // pred_check_branch
          %743 = sbr.rel (%p741) target = $region64
        $region63: #{tpu_custom_call.1} parent=39 // pred_region
          %s745 = ssub.s32 128, 128
          %746 = vsyncadd [#allocation5], %s745
          %s747 = smul.addr %s27, 128
          %s748 = scalar_lea.hbm %s5, %s747
          %s750 = sshll.u32 [#allocation9], 4
          %s751 = int_to_ptr.vmem [resolvable:$true] %s750
          %753 = dma.vmem_to_hbm [thread:$0]  %s751, 128, %s748, [#allocation5]
        $region64: #{tpu_custom_call.1} parent=39 // pred_fallthru
          _
        // Predicated region
        $region65: #{tpu_custom_call.1} parent=39 // pred_check
          %p754 = pneg %p170
        $region66: #{tpu_custom_call.1} parent=39 // pred_check_branch
          %756 = sbr.rel (%p754) target = $region68
        $region67: #{tpu_custom_call.1} parent=39 // pred_region
          %757 = dma.done [#allocation5], 128
        $region68: #{tpu_custom_call.1} parent=39 // pred_fallthru
          _
      $region40: #{tpu_custom_call.1} parent=5 // pred_fallthru
        _
      %p758 = scmp.le.s32.totalorder 2, %s18
      // Predicated region
      $region69: #{tpu_custom_call.1} parent=5 // pred_check
        %p759 = pneg %p758
      $region70: #{tpu_custom_call.1} parent=5 // pred_check_branch
        %761 = sbr.rel (%p759) target = $region72
      $region71: #{tpu_custom_call.1} parent=5 // pred_region
        %s762 = ssub.s32 %s18, 2
      $region72: #{tpu_custom_call.1} parent=5 // pred_fallthru
        _
    $region6: #{tpu_custom_call.1} parent=1 // loop_footer
      %s22 = sadd.s32 1, %s18
    $region7: #{tpu_custom_call.1} parent=1 // loop_footer_branch
      %17 = sbr.rel target = $region3
    $region8: #{tpu_custom_call.1} parent=1 // loop_exit
      _
    %763 = vsyncpa [#allocation4], 1
    %s764 = scalar_lea.sflag [#allocation4], 1
    %765 = vsyncpa %s764, 1
    %766 = vsyncpa [#allocation7], 1
    %s767 = scalar_lea.sflag [#allocation7], 1
    %768 = vsyncpa %s767, 1
    %769 = vsyncpa [#allocation5], 1
    %s770 = scalar_lea.sflag [#allocation5], 1
    %771 = vsyncpa %s770, 1

</llo_original>
